<compile_context>
chip_gen: v6e
topology: v6e:2x2x1
jax: 0.10.0
libtpu: 0.0.40
codegen_flags: <defaults>
</compile_context>

<pallas_src>
import jax
import jax.numpy as jnp
from jax.experimental import pallas as pl
from jax.experimental.pallas import tpu as pltpu

_MIB = 1024 * 1024


def _round_up(n: int, m: int) -> int:
    return ((n + m - 1) // m) * m


def _make_kernel(num_main_layers: int, compute_dtype):
    """Builds a fused-MLP kernel body for a fixed layer count."""

    def kernel(x_ref, *refs):
        # refs = (w1, b1, [w_main_i, b_main_i]*, w_final, b_final, sig_ref)
        params = refs[:-1]
        sig_ref = refs[-1]

        h = x_ref[...]                                   # (bt, in) bf16

        # fc1 + relu (f32 accumulation on the MXU, bias added in f32)
        w1, b1 = params[0], params[1]
        acc = jnp.dot(h, w1[...], preferred_element_type=jnp.float32) + b1[...]
        h = jnp.maximum(acc, 0.0).astype(compute_dtype)
        # dropout: identity in eval mode.

        # main layers + relu
        idx = 2
        for _ in range(num_main_layers):
            w, b = params[idx], params[idx + 1]
            idx += 2
            acc = jnp.dot(h, w[...], preferred_element_type=jnp.float32) + b[...]
            h = jnp.maximum(acc, 0.0).astype(compute_dtype)

        # fc_final -> sigmoid (EUP); single lane-dense f32 store of the exact
        # sigmoid over the full 2*num_items width.
        wf, bf = params[idx], params[idx + 1]
        out = jnp.dot(h, wf[...], preferred_element_type=jnp.float32) + bf[...]
        sig_ref[...] = jax.nn.sigmoid(out)

    return kernel


def _param_block_spec(shape):
    """Grid-invariant parameter block (constant index) -> single-buffered."""
    kwargs = {}
    if hasattr(pl, "Buffered"):
        kwargs["pipeline_mode"] = pl.Buffered(1)
    return pl.BlockSpec(shape, lambda i: (0, 0), **kwargs)


def _pick_batch_tile(B: int, requested) -> int:
    if requested is not None:
        return max(16, min(int(requested), _round_up(B, 16)))
    if B >= 512:
        return 256               # full MXU rows + >=2 steps (both v7x TCs)
    if B >= 256:
        return 128               # keep >=2 parallel steps for dual-TC v7x
    return _round_up(B, 16)      # single step at small B (v5e/v6e friendly)


def multi_channel_generator_forward(
    x, params, *, num_items, batch_tile=None, compute_dtype=jnp.bfloat16
):
    """Runs the fused MLP.

    x: (B, input_size) f32.
    params: flat list of (w, b) pairs in order [fc1, main..., fc_final],
            w: (in, out), b: (1, out)  (transposed vs. PyTorch nn.Linear).
    Returns (rating_values (B, 2*num_items) f32,
             existence_flags (B, num_items) f32).
    """
    B, in_features = x.shape
    num_main_layers = len(params) // 2 - 2
    out_width = 2 * num_items

    bt = _pick_batch_tile(B, batch_tile)
    Bp = _round_up(B, bt)

    xk = x.astype(compute_dtype)
    if Bp != B:
        xk = jnp.pad(xk, ((0, Bp - B), (0, 0)))

    # bf16 weights (halve DMA/VMEM, MXU-native), f32 biases.
    kernel_params = [
        p.astype(compute_dtype) if i % 2 == 0 else p.astype(jnp.float32)
        for i, p in enumerate(params)
    ]

    # BlockSpecs: batch is tiled; all weights/biases are grid-invariant and
    # single-buffered (constant block index -> resident across grid steps).
    x_spec = pl.BlockSpec((bt, in_features), lambda i: (i, 0))
    param_specs = [_param_block_spec(p.shape) for p in kernel_params]
    sig_spec = pl.BlockSpec((bt, out_width), lambda i: (i, 0))

    # Explicit VMEM budget (keeps us honest on v7x's 64 MiB).
    param_bytes = sum(int(p.size) * p.dtype.itemsize for p in kernel_params)
    widths = [int(kernel_params[2 * i].shape[1])
              for i in range(len(kernel_params) // 2)]
    max_w = max(widths + [in_features])
    vmem_need = (
        2 * bt * in_features * 2        # x: double-buffered bf16
        + 2 * param_bytes               # params (headroom even if double-buffered)
        + 2 * bt * out_width * 4        # sigmoid output: double-buffered f32
        + 4 * bt * max_w * 4            # activations / internal scratch margin
    )
    vmem_limit = int(min(48 * _MIB, max(16 * _MIB, 1.5 * vmem_need)))

    # Scheduling hint for XLA when this call is fused into a larger graph.
    flops = 2 * Bp * sum(
        int(kernel_params[2 * i].shape[0]) * int(kernel_params[2 * i].shape[1])
        for i in range(len(kernel_params) // 2)
    )
    bytes_accessed = (
        int(xk.size) * xk.dtype.itemsize
        + param_bytes
        + Bp * out_width * 4
    )
    cost = pl.CostEstimate(
        flops=flops, transcendentals=Bp * out_width, bytes_accessed=bytes_accessed
    )

    sig = pl.pallas_call(
        _make_kernel(num_main_layers, compute_dtype),
        out_shape=jax.ShapeDtypeStruct((Bp, out_width), jnp.float32),
        grid_spec=pl.GridSpec(
            grid=(Bp // bt,),
            in_specs=[x_spec] + param_specs,
            out_specs=sig_spec,
        ),
        compiler_params=pltpu.CompilerParams(
            dimension_semantics=("parallel",),
            vmem_limit_bytes=vmem_limit,
        ),
        cost_estimate=cost,
    )(xk, *kernel_params)

    sig = sig[:B]
    # Exact PyTorch semantics: rating over the full width, existence is the
    # exact sigmoid of the second num_items chunk (no affine round-trip).
    rating = sig * 4.5 + 0.5
    exist = sig[:, num_items:]
    return rating, exist


def init_params(key, input_size, fc1_size, main_sizes, num_items):
    """Deterministic synthetic parameter init (w:(in,out), b:(1,out)), f32."""
    sizes = [(input_size, fc1_size)]
    prev = fc1_size
    for s in main_sizes:
        sizes.append((prev, s))
        prev = s
    sizes.append((prev, num_items * 2))

    params = []
    for fan_in, fan_out in sizes:
        key, kw, kb = jax.random.split(key, 3)
        bound = 1.0 / jnp.sqrt(fan_in)
        w = jax.random.uniform(kw, (fan_in, fan_out), jnp.float32, -bound, bound)
        b = jax.random.uniform(kb, (1, fan_out), jnp.float32, -bound, bound)
        params.extend([w, b])
    return params


def reference_forward(x, params, num_items, compute_dtype=jnp.bfloat16):
    """Pure-JAX reference mirroring the PyTorch forward at matching precision
    (bf16 weights/activations, f32 accumulation)."""
    n_pairs = len(params) // 2
    h = x.astype(compute_dtype)
    for i in range(n_pairs - 1):
        w = params[2 * i].astype(compute_dtype)
        b = params[2 * i + 1].astype(jnp.float32)
        h = jnp.maximum(
            jnp.dot(h, w, preferred_element_type=jnp.float32) + b, 0.0
        ).astype(compute_dtype)
    wf = params[-2].astype(compute_dtype)
    bf = params[-1].astype(jnp.float32)
    out = jnp.dot(h, wf, preferred_element_type=jnp.float32) + bf
    sig = jax.nn.sigmoid(out)
    rating = sig * 4.5 + 0.5
    exist = sig[:, num_items:]
    return rating, exist


if __name__ == "__main__":
    # Small shapes consistent with the module's constructor (widths chosen as
    # multiples of 128 so the MXU contraction axis is never underfilled).
    input_size = 128
    fc1_size = 256
    main_sizes = (256, 256)
    num_items = 64          # -> final width 128 (lane-dense)
    dropout_rate = 0.2      # identity in eval mode
    batch = 256             # adaptive tile -> 2 parallel steps (feeds both v7x TCs)

    key = jax.random.PRNGKey(0)
    key, kx = jax.random.split(key)
    x = jax.random.normal(kx, (batch, input_size), jnp.float32)
    params = init_params(key, input_size, fc1_size, main_sizes, num_items)

    rating, exist = multi_channel_generator_forward(x, params, num_items=num_items)
    rating = jax.block_until_ready(rating)
    exist = jax.block_until_ready(exist)

    # Correctness check against a same-precision pure-JAX reference.
    rating_ref, exist_ref = reference_forward(x, params, num_items)
    assert rating.shape == (batch, 2 * num_items)
    assert exist.shape == (batch, num_items)
    assert jnp.allclose(rating, rating_ref, atol=2e-2, rtol=2e-2)
    assert jnp.allclose(exist, exist_ref, atol=2e-2, rtol=2e-2)
    # existence_flags must be the exact sigmoid of the second chunk of the
    # kernel output (no affine round-trip error).
    assert jnp.array_equal(exist, (rating[:, num_items:] - 0.5) / 4.5) or jnp.allclose(
        exist, (rating[:, num_items:] - 0.5) / 4.5, atol=1e-6
    )

    print("KERNEL_OK")
</pallas_src>

<mosaic_0001>
module attributes {stable_mosaic.version = 11 : i64} {
  func.func @kernel(%arg0: i32, %arg1: memref<128x128xbf16, #tpu.memory_space<vmem>>, %arg2: memref<128x256xbf16, #tpu.memory_space<vmem>>, %arg3: memref<1x256xf32, #tpu.memory_space<vmem>>, %arg4: memref<256x256xbf16, #tpu.memory_space<vmem>>, %arg5: memref<1x256xf32, #tpu.memory_space<vmem>>, %arg6: memref<256x256xbf16, #tpu.memory_space<vmem>>, %arg7: memref<1x256xf32, #tpu.memory_space<vmem>>, %arg8: memref<256x128xbf16, #tpu.memory_space<vmem>>, %arg9: memref<1x128xf32, #tpu.memory_space<vmem>>, %arg10: memref<128x128xf32, #tpu.memory_space<vmem>>) attributes {dimension_semantics = [#tpu.dimension_semantics<parallel>], iteration_bounds = array<i64: 2>, scalar_prefetch = 0 : i64, scratch_operands = 0 : i64, tpu.core_type = #tpu.core_type<tc>, window_params = [{transform_indices = @transform_0, window_bounds = array<i64: 128, 128>}, {pipeline_mode = #tpu.pipeline_mode<synchronous>, transform_indices = @transform_1, window_bounds = array<i64: 128, 256>}, {pipeline_mode = #tpu.pipeline_mode<synchronous>, transform_indices = @transform_2, window_bounds = array<i64: 1, 256>}, {pipeline_mode = #tpu.pipeline_mode<synchronous>, transform_indices = @transform_3, window_bounds = array<i64: 256, 256>}, {pipeline_mode = #tpu.pipeline_mode<synchronous>, transform_indices = @transform_4, window_bounds = array<i64: 1, 256>}, {pipeline_mode = #tpu.pipeline_mode<synchronous>, transform_indices = @transform_5, window_bounds = array<i64: 256, 256>}, {pipeline_mode = #tpu.pipeline_mode<synchronous>, transform_indices = @transform_6, window_bounds = array<i64: 1, 256>}, {pipeline_mode = #tpu.pipeline_mode<synchronous>, transform_indices = @transform_7, window_bounds = array<i64: 256, 128>}, {pipeline_mode = #tpu.pipeline_mode<synchronous>, transform_indices = @transform_8, window_bounds = array<i64: 1, 128>}, {transform_indices = @transform_9, window_bounds = array<i64: 128, 128>}]} {
    %c0 = arith.constant 0 : index
    %c0_0 = arith.constant 0 : index
    %0 = vector.load %arg1[%c0, %c0_0] : memref<128x128xbf16, #tpu.memory_space<vmem>>, vector<128x128xbf16>
    %c0_1 = arith.constant 0 : index
    %c0_2 = arith.constant 0 : index
    %1 = vector.load %arg2[%c0_1, %c0_2] : memref<128x256xbf16, #tpu.memory_space<vmem>>, vector<128x256xbf16>
    %cst = arith.constant dense<0.000000e+00> : vector<128x256xf32>
    %2 = tpu.matmul %0, %1, %cst {dimension_numbers = #tpu.dot_dimension_numbers<[1], [0], [0], [1], [0, 0, 1, 1], [], []>} : vector<128x128xbf16>, vector<128x256xbf16>, vector<128x256xf32> -> vector<128x256xf32>
    %c0_3 = arith.constant 0 : index
    %c0_4 = arith.constant 0 : index
    %3 = vector.load %arg3[%c0_3, %c0_4] : memref<1x256xf32, #tpu.memory_space<vmem>>, vector<1x256xf32>
    %4 = vector.broadcast %3 : vector<1x256xf32> to vector<128x256xf32>
    %5 = arith.addf %2, %4 : vector<128x256xf32>
    %cst_5 = arith.constant 0.000000e+00 : f32
    %6 = vector.broadcast %cst_5 : f32 to vector<128x256xf32>
    %7 = arith.maximumf %5, %6 : vector<128x256xf32>
    %8 = arith.truncf %7 : vector<128x256xf32> to vector<128x256xbf16>
    %c0_6 = arith.constant 0 : index
    %c0_7 = arith.constant 0 : index
    %9 = vector.load %arg4[%c0_6, %c0_7] : memref<256x256xbf16, #tpu.memory_space<vmem>>, vector<256x256xbf16>
    %cst_8 = arith.constant dense<0.000000e+00> : vector<128x256xf32>
    %10 = tpu.matmul %8, %9, %cst_8 {dimension_numbers = #tpu.dot_dimension_numbers<[1], [0], [0], [1], [0, 0, 1, 1], [], []>} : vector<128x256xbf16>, vector<256x256xbf16>, vector<128x256xf32> -> vector<128x256xf32>
    %c0_9 = arith.constant 0 : index
    %c0_10 = arith.constant 0 : index
    %11 = vector.load %arg5[%c0_9, %c0_10] : memref<1x256xf32, #tpu.memory_space<vmem>>, vector<1x256xf32>
    %12 = vector.broadcast %11 : vector<1x256xf32> to vector<128x256xf32>
    %13 = arith.addf %10, %12 : vector<128x256xf32>
    %cst_11 = arith.constant 0.000000e+00 : f32
    %14 = vector.broadcast %cst_11 : f32 to vector<128x256xf32>
    %15 = arith.maximumf %13, %14 : vector<128x256xf32>
    %16 = arith.truncf %15 : vector<128x256xf32> to vector<128x256xbf16>
    %c0_12 = arith.constant 0 : index
    %c0_13 = arith.constant 0 : index
    %17 = vector.load %arg6[%c0_12, %c0_13] : memref<256x256xbf16, #tpu.memory_space<vmem>>, vector<256x256xbf16>
    %cst_14 = arith.constant dense<0.000000e+00> : vector<128x256xf32>
    %18 = tpu.matmul %16, %17, %cst_14 {dimension_numbers = #tpu.dot_dimension_numbers<[1], [0], [0], [1], [0, 0, 1, 1], [], []>} : vector<128x256xbf16>, vector<256x256xbf16>, vector<128x256xf32> -> vector<128x256xf32>
    %c0_15 = arith.constant 0 : index
    %c0_16 = arith.constant 0 : index
    %19 = vector.load %arg7[%c0_15, %c0_16] : memref<1x256xf32, #tpu.memory_space<vmem>>, vector<1x256xf32>
    %20 = vector.broadcast %19 : vector<1x256xf32> to vector<128x256xf32>
    %21 = arith.addf %18, %20 : vector<128x256xf32>
    %cst_17 = arith.constant 0.000000e+00 : f32
    %22 = vector.broadcast %cst_17 : f32 to vector<128x256xf32>
    %23 = arith.maximumf %21, %22 : vector<128x256xf32>
    %24 = arith.truncf %23 : vector<128x256xf32> to vector<128x256xbf16>
    %c0_18 = arith.constant 0 : index
    %c0_19 = arith.constant 0 : index
    %25 = vector.load %arg8[%c0_18, %c0_19] : memref<256x128xbf16, #tpu.memory_space<vmem>>, vector<256x128xbf16>
    %cst_20 = arith.constant dense<0.000000e+00> : vector<128x128xf32>
    %26 = tpu.matmul %24, %25, %cst_20 {dimension_numbers = #tpu.dot_dimension_numbers<[1], [0], [0], [1], [0, 0, 1, 1], [], []>} : vector<128x256xbf16>, vector<256x128xbf16>, vector<128x128xf32> -> vector<128x128xf32>
    %c0_21 = arith.constant 0 : index
    %c0_22 = arith.constant 0 : index
    %27 = vector.load %arg9[%c0_21, %c0_22] : memref<1x128xf32, #tpu.memory_space<vmem>>, vector<1x128xf32>
    %28 = vector.broadcast %27 : vector<1x128xf32> to vector<128x128xf32>
    %29 = arith.addf %26, %28 : vector<128x128xf32>
    %30 = arith.negf %29 : vector<128x128xf32>
    %31 = math.exp %30 : vector<128x128xf32>
    %cst_23 = arith.constant 1.000000e+00 : f32
    %32 = vector.broadcast %cst_23 : f32 to vector<128x128xf32>
    %33 = arith.addf %32, %31 : vector<128x128xf32>
    %34 = arith.divf %32, %33 : vector<128x128xf32>
    %c0_24 = arith.constant 0 : index
    %c0_25 = arith.constant 0 : index
    %35 = vector.load %arg10[%c0_24, %c0_25] : memref<128x128xf32, #tpu.memory_space<vmem>>, vector<128x128xf32>
    tpu.vector_store %arg10[%c0_24, %c0_25], %34 {strides = array<i32>} : memref<128x128xf32, #tpu.memory_space<vmem>>, vector<128x128xf32>,
    return
  }
  func.func @transform_0(%arg0: i32) -> (i32, i32) {
    %c0_i32 = arith.constant 0 : i32
    %c0_i32_0 = arith.constant 0 : i32
    return %arg0, %c0_i32 : i32, i32
  }
  func.func @transform_1(%arg0: i32) -> (i32, i32) {
    %c0_i32 = arith.constant 0 : i32
    %c0_i32_0 = arith.constant 0 : i32
    %c0_i32_1 = arith.constant 0 : i32
    return %c0_i32, %c0_i32_0 : i32, i32
  }
  func.func @transform_2(%arg0: i32) -> (i32, i32) {
    %c0_i32 = arith.constant 0 : i32
    %c0_i32_0 = arith.constant 0 : i32
    %c0_i32_1 = arith.constant 0 : i32
    return %c0_i32, %c0_i32_0 : i32, i32
  }
  func.func @transform_3(%arg0: i32) -> (i32, i32) {
    %c0_i32 = arith.constant 0 : i32
    %c0_i32_0 = arith.constant 0 : i32
    %c0_i32_1 = arith.constant 0 : i32
    return %c0_i32, %c0_i32_0 : i32, i32
  }
  func.func @transform_4(%arg0: i32) -> (i32, i32) {
    %c0_i32 = arith.constant 0 : i32
    %c0_i32_0 = arith.constant 0 : i32
    %c0_i32_1 = arith.constant 0 : i32
    return %c0_i32, %c0_i32_0 : i32, i32
  }
  func.func @transform_5(%arg0: i32) -> (i32, i32) {
    %c0_i32 = arith.constant 0 : i32
    %c0_i32_0 = arith.constant 0 : i32
    %c0_i32_1 = arith.constant 0 : i32
    return %c0_i32, %c0_i32_0 : i32, i32
  }
  func.func @transform_6(%arg0: i32) -> (i32, i32) {
    %c0_i32 = arith.constant 0 : i32
    %c0_i32_0 = arith.constant 0 : i32
    %c0_i32_1 = arith.constant 0 : i32
    return %c0_i32, %c0_i32_0 : i32, i32
  }
  func.func @transform_7(%arg0: i32) -> (i32, i32) {
    %c0_i32 = arith.constant 0 : i32
    %c0_i32_0 = arith.constant 0 : i32
    %c0_i32_1 = arith.constant 0 : i32
    return %c0_i32, %c0_i32_0 : i32, i32
  }
  func.func @transform_8(%arg0: i32) -> (i32, i32) {
    %c0_i32 = arith.constant 0 : i32
    %c0_i32_0 = arith.constant 0 : i32
    %c0_i32_1 = arith.constant 0 : i32
    return %c0_i32, %c0_i32_0 : i32, i32
  }
  func.func @transform_9(%arg0: i32) -> (i32, i32) {
    %c0_i32 = arith.constant 0 : i32
    %c0_i32_0 = arith.constant 0 : i32
    return %arg0, %c0_i32 : i32, i32
  }
}

</mosaic_0001>

<llo_original>
// kernel: tpu_custom_call.1
$region0: #{tpu_custom_call.1}
  #allocation0 [shape = 'u32[]', space=smem, size = 0x4, offset = 0x4, fixed_abs, tag = 'smem constant byte address 0x4 - core index']
  #allocation1 [shape = 'u32[144,128]{1,0:T(1,128)}', space=vmem, size = 0x12000, scoped, tag = 'internal scratch']
  %s0 = inlined_call_operand.hbm [shape: bf16[256,128], index: 0, kind: input, shape index: {}]
  %s1 = inlined_call_operand.hbm [shape: bf16[128,256], index: 1, kind: input, shape index: {}]
  %s2 = inlined_call_operand.vmem [shape: f32[1,256], index: 2, kind: input, shape index: {}]
  %s3 = inlined_call_operand.hbm [shape: bf16[256,256], index: 3, kind: input, shape index: {}]
  %s4 = inlined_call_operand.vmem [shape: f32[1,256], index: 4, kind: input, shape index: {}]
  %s5 = inlined_call_operand.hbm [shape: bf16[256,256], index: 5, kind: input, shape index: {}]
  %s6 = inlined_call_operand.vmem [shape: f32[1,256], index: 6, kind: input, shape index: {}]
  %s7 = inlined_call_operand.hbm [shape: bf16[256,128], index: 7, kind: input, shape index: {}]
  %s8 = inlined_call_operand.vmem [shape: f32[1,128], index: 8, kind: input, shape index: {}]
  %s9 = inlined_call_operand.hbm [shape: f32[256,128], index: 9, kind: output, shape index: {}]
  %s10 = sld [smem:[#allocation0]]
  $region89: #{tpu_custom_call.1} parent=0
    _
  %s12 = ssub.s32 1, %s10
  %s13 = scalar_select 0, %s12, %s10
  $region1: #{tpu_custom_call.1} parent=0
    #allocation2 [shape = 'u8[65536]{0}', space=vmem, size = 0x10000, scoped, tag = 'input window, operand 0']
    #allocation3 [shape = 's32[2]{0}', space=sflag, size = 0x8, scoped, tag = 'scoped memory for tpu_custom_call.1']
    #allocation4 [shape = 's32[2]{0}', space=sflag, size = 0x8, scoped, tag = 'scoped memory for tpu_custom_call.1']
    #allocation5 [shape = 'u8[65536]{0}', space=vmem, size = 0x10000, scoped, tag = 'input window, operand 1, single buffered']
    #allocation6 [shape = 's32[1]{0}', space=sflag, size = 0x4, scoped, tag = 'scoped memory for tpu_custom_call.1']
    #allocation7 [shape = 'u8[131072]{0}', space=vmem, size = 0x20000, scoped, tag = 'input window, operand 3, single buffered']
    #allocation8 [shape = 'u8[131072]{0}', space=vmem, size = 0x20000, scoped, tag = 'input window, operand 5, single buffered']
    #allocation9 [shape = 's32[1]{0}', space=sflag, size = 0x4, scoped, tag = 'scoped memory for tpu_custom_call.1']
    #allocation10 [shape = 'u8[65536]{0}', space=vmem, size = 0x10000, scoped, tag = 'input window, operand 7, single buffered']
    #allocation11 [shape = 'u8[131072]{0}', space=vmem, size = 0x20000, scoped, tag = 'output window, operand 0']
    %14 = vsyncpa [#allocation3], 0
    %s15 = scalar_lea.sflag [#allocation3], 1
    %16 = vsyncpa %s15, 0
    %17 = vsyncpa [#allocation6], 0
    %18 = vsyncpa [#allocation9], 0
    %19 = vsyncpa [#allocation4], 0
    %s20 = scalar_lea.sflag [#allocation4], 1
    %21 = vsyncpa %s20, 0
    loop: start=0, step=1, limit=4
    $region2: #{tpu_custom_call.1} parent=1 // loop_pre_header
      _
    $region3: #{tpu_custom_call.1} parent=1 // loop_header
      %s23 = sphi 0, %s27
      %p24 = scmp.ge.s32.totalorder %s23, 4
      %s33 = sphi 0, %s35
      %s36 = sphi 0, %s33
      %s37 = sphi 0, %s36
      %s53 = sphi 0, %s37
      %s57 = sphi 0, %s57
      %s59 = sphi 0, %s57
      %s60 = sphi 0, %s59
      %s74 = sphi 0, %s60
      %s78 = sphi 0, %s78
      %s80 = sphi 0, %s78
      %s81 = sphi 0, %s80
      %s95 = sphi 0, %s81
      %s99 = sphi 0, %s99
      %s101 = sphi 0, %s99
      %s102 = sphi 0, %s101
      %s116 = sphi 0, %s102
      %s120 = sphi 0, %s120
      %s122 = sphi 0, %s120
      %s123 = sphi 0, %s122
      %s137 = sphi 0, %s123
      %s141 = sphi 0, %s141
      %s143 = sphi 0, %s141
      %s144 = sphi 0, %s143
      %s158 = sphi 0, %s144
      %s162 = sphi 0, %s162
      %s164 = sphi 0, %s162
      %s165 = sphi 0, %s164
      %s179 = sphi 0, %s165
      %s183 = sphi 0, %s183
      %s185 = sphi 0, %s183
      %s186 = sphi 0, %s185
      %s200 = sphi 0, %s186
      %s204 = sphi 0, %s204
      %s206 = sphi 0, %s204
      %s207 = sphi 0, %s206
      %s221 = sphi 0, %s207
      %s227 = sphi 0, %s229
      %s230 = sphi 0, %s227
      %s231 = sphi 0, %s230
      %s247 = sphi 0, %s231
    $region4: #{tpu_custom_call.1} parent=1 // loop_header_branch
      %26 = sbr.rel (%p24) target = $region8
    $region5: #{tpu_custom_call.1} parent=1 // loop_body
      %s28 = ssub.s32 %s23, 1
      %s29 = ssub.s32 %s23, 2
      %s30 = sadd.s32 %s23, 1
      %s31 = ssub.s32 %s23, %s30
      %p32 = scmp.eq.s32.totalorder %s31, 0
      %s34 = sadd.s32 %s33, 1
      %s35 = scalar_select %p32, %s33, %s34
      %p38 = pneg %p32
      %p39 = scmp.eq.s32.totalorder %s23, 1
      %p40 = por %p38, %p39
      %p41 = scmp.ne.s32.totalorder %s33, %s36
      %p42 = scmp.eq.s32.totalorder %s23, 0
      %p43 = por %p41, %p42
      %p44 = scmp.ne.s32.totalorder %s33, %s36
      %p45 = scmp.eq.s32.totalorder %s28, 1
      %p46 = por %p44, %p45
      %p47 = scmp.ne.s32.totalorder %s36, %s37
      %p48 = scmp.eq.s32.totalorder %s28, 0
      %p49 = por %p47, %p48
      %p50 = scmp.ne.s32.totalorder %s36, %s37
      %p51 = scmp.eq.s32.totalorder %s29, 1
      %p52 = por %p50, %p51
      %p54 = scmp.ne.s32.totalorder %s37, %s53
      %p55 = scmp.eq.s32.totalorder %s29, 0
      %p56 = por %p54, %p55
      %s58 = sadd.s32 %s57, 1
      %p61 = scmp.eq.s32.totalorder %s23, 1
      %p62 = scmp.ne.s32.totalorder %s57, %s59
      %p63 = scmp.eq.s32.totalorder %s23, 0
      %p64 = por %p62, %p63
      %p65 = scmp.ne.s32.totalorder %s57, %s59
      %p66 = scmp.eq.s32.totalorder %s28, 1
      %p67 = por %p65, %p66
      %p68 = scmp.ne.s32.totalorder %s59, %s60
      %p69 = scmp.eq.s32.totalorder %s28, 0
      %p70 = por %p68, %p69
      %p71 = scmp.ne.s32.totalorder %s59, %s60
      %p72 = scmp.eq.s32.totalorder %s29, 1
      %p73 = por %p71, %p72
      %p75 = scmp.ne.s32.totalorder %s60, %s74
      %p76 = scmp.eq.s32.totalorder %s29, 0
      %p77 = por %p75, %p76
      %s79 = sadd.s32 %s78, 1
      %p82 = scmp.eq.s32.totalorder %s23, 1
      %p83 = scmp.ne.s32.totalorder %s78, %s80
      %p84 = scmp.eq.s32.totalorder %s23, 0
      %p85 = por %p83, %p84
      %p86 = scmp.ne.s32.totalorder %s78, %s80
      %p87 = scmp.eq.s32.totalorder %s28, 1
      %p88 = por %p86, %p87
      %p89 = scmp.ne.s32.totalorder %s80, %s81
      %p90 = scmp.eq.s32.totalorder %s28, 0
      %p91 = por %p89, %p90
      %p92 = scmp.ne.s32.totalorder %s80, %s81
      %p93 = scmp.eq.s32.totalorder %s29, 1
      %p94 = por %p92, %p93
      %p96 = scmp.ne.s32.totalorder %s81, %s95
      %p97 = scmp.eq.s32.totalorder %s29, 0
      %p98 = por %p96, %p97
      %s100 = sadd.s32 %s99, 1
      %p103 = scmp.eq.s32.totalorder %s23, 1
      %p104 = scmp.ne.s32.totalorder %s99, %s101
      %p105 = scmp.eq.s32.totalorder %s23, 0
      %p106 = por %p104, %p105
      %p107 = scmp.ne.s32.totalorder %s99, %s101
      %p108 = scmp.eq.s32.totalorder %s28, 1
      %p109 = por %p107, %p108
      %p110 = scmp.ne.s32.totalorder %s101, %s102
      %p111 = scmp.eq.s32.totalorder %s28, 0
      %p112 = por %p110, %p111
      %p113 = scmp.ne.s32.totalorder %s101, %s102
      %p114 = scmp.eq.s32.totalorder %s29, 1
      %p115 = por %p113, %p114
      %p117 = scmp.ne.s32.totalorder %s102, %s116
      %p118 = scmp.eq.s32.totalorder %s29, 0
      %p119 = por %p117, %p118
      %s121 = sadd.s32 %s120, 1
      %p124 = scmp.eq.s32.totalorder %s23, 1
      %p125 = scmp.ne.s32.totalorder %s120, %s122
      %p126 = scmp.eq.s32.totalorder %s23, 0
      %p127 = por %p125, %p126
      %p128 = scmp.ne.s32.totalorder %s120, %s122
      %p129 = scmp.eq.s32.totalorder %s28, 1
      %p130 = por %p128, %p129
      %p131 = scmp.ne.s32.totalorder %s122, %s123
      %p132 = scmp.eq.s32.totalorder %s28, 0
      %p133 = por %p131, %p132
      %p134 = scmp.ne.s32.totalorder %s122, %s123
      %p135 = scmp.eq.s32.totalorder %s29, 1
      %p136 = por %p134, %p135
      %p138 = scmp.ne.s32.totalorder %s123, %s137
      %p139 = scmp.eq.s32.totalorder %s29, 0
      %p140 = por %p138, %p139
      %s142 = sadd.s32 %s141, 1
      %p145 = scmp.eq.s32.totalorder %s23, 1
      %p146 = scmp.ne.s32.totalorder %s141, %s143
      %p147 = scmp.eq.s32.totalorder %s23, 0
      %p148 = por %p146, %p147
      %p149 = scmp.ne.s32.totalorder %s141, %s143
      %p150 = scmp.eq.s32.totalorder %s28, 1
      %p151 = por %p149, %p150
      %p152 = scmp.ne.s32.totalorder %s143, %s144
      %p153 = scmp.eq.s32.totalorder %s28, 0
      %p154 = por %p152, %p153
      %p155 = scmp.ne.s32.totalorder %s143, %s144
      %p156 = scmp.eq.s32.totalorder %s29, 1
      %p157 = por %p155, %p156
      %p159 = scmp.ne.s32.totalorder %s144, %s158
      %p160 = scmp.eq.s32.totalorder %s29, 0
      %p161 = por %p159, %p160
      %s163 = sadd.s32 %s162, 1
      %p166 = scmp.eq.s32.totalorder %s23, 1
      %p167 = scmp.ne.s32.totalorder %s162, %s164
      %p168 = scmp.eq.s32.totalorder %s23, 0
      %p169 = por %p167, %p168
      %p170 = scmp.ne.s32.totalorder %s162, %s164
      %p171 = scmp.eq.s32.totalorder %s28, 1
      %p172 = por %p170, %p171
      %p173 = scmp.ne.s32.totalorder %s164, %s165
      %p174 = scmp.eq.s32.totalorder %s28, 0
      %p175 = por %p173, %p174
      %p176 = scmp.ne.s32.totalorder %s164, %s165
      %p177 = scmp.eq.s32.totalorder %s29, 1
      %p178 = por %p176, %p177
      %p180 = scmp.ne.s32.totalorder %s165, %s179
      %p181 = scmp.eq.s32.totalorder %s29, 0
      %p182 = por %p180, %p181
      %s184 = sadd.s32 %s183, 1
      %p187 = scmp.eq.s32.totalorder %s23, 1
      %p188 = scmp.ne.s32.totalorder %s183, %s185
      %p189 = scmp.eq.s32.totalorder %s23, 0
      %p190 = por %p188, %p189
      %p191 = scmp.ne.s32.totalorder %s183, %s185
      %p192 = scmp.eq.s32.totalorder %s28, 1
      %p193 = por %p191, %p192
      %p194 = scmp.ne.s32.totalorder %s185, %s186
      %p195 = scmp.eq.s32.totalorder %s28, 0
      %p196 = por %p194, %p195
      %p197 = scmp.ne.s32.totalorder %s185, %s186
      %p198 = scmp.eq.s32.totalorder %s29, 1
      %p199 = por %p197, %p198
      %p201 = scmp.ne.s32.totalorder %s186, %s200
      %p202 = scmp.eq.s32.totalorder %s29, 0
      %p203 = por %p201, %p202
      %s205 = sadd.s32 %s204, 1
      %p208 = scmp.eq.s32.totalorder %s23, 1
      %p209 = scmp.ne.s32.totalorder %s204, %s206
      %p210 = scmp.eq.s32.totalorder %s23, 0
      %p211 = por %p209, %p210
      %p212 = scmp.ne.s32.totalorder %s204, %s206
      %p213 = scmp.eq.s32.totalorder %s28, 1
      %p214 = por %p212, %p213
      %p215 = scmp.ne.s32.totalorder %s206, %s207
      %p216 = scmp.eq.s32.totalorder %s28, 0
      %p217 = por %p215, %p216
      %p218 = scmp.ne.s32.totalorder %s206, %s207
      %p219 = scmp.eq.s32.totalorder %s29, 1
      %p220 = por %p218, %p219
      %p222 = scmp.ne.s32.totalorder %s207, %s221
      %p223 = scmp.eq.s32.totalorder %s29, 0
      %p224 = por %p222, %p223
      %s225 = ssub.s32 %s23, %s30
      %p226 = scmp.eq.s32.totalorder %s225, 0
      %s228 = sadd.s32 %s227, 1
      %s229 = scalar_select %p226, %s227, %s228
      %p232 = pneg %p226
      %p233 = scmp.eq.s32.totalorder %s23, 1
      %p234 = por %p232, %p233
      %p235 = scmp.ne.s32.totalorder %s227, %s230
      %p236 = scmp.eq.s32.totalorder %s23, 0
      %p237 = por %p235, %p236
      %p238 = scmp.ne.s32.totalorder %s227, %s230
      %p239 = scmp.eq.s32.totalorder %s28, 1
      %p240 = por %p238, %p239
      %p241 = scmp.ne.s32.totalorder %s230, %s231
      %p242 = scmp.eq.s32.totalorder %s28, 0
      %p243 = por %p241, %p242
      %p244 = scmp.ne.s32.totalorder %s230, %s231
      %p245 = scmp.eq.s32.totalorder %s29, 1
      %p246 = por %p244, %p245
      %p248 = scmp.ne.s32.totalorder %s231, %s247
      %p249 = scmp.eq.s32.totalorder %s29, 0
      %p250 = por %p248, %p249
      %p251 = scmp.le.s32.totalorder 1, %s23
      %p252 = scmp.lt.s32.totalorder %s23, 3
      %p253 = pnand %p251, %p252
      %p254 = pneg %p253
      // Predicated region
      $region9: #{tpu_custom_call.1} parent=5 // pred_check
        _
      $region10: #{tpu_custom_call.1} parent=5 // pred_check_branch
        %256 = sbr.rel (%p253) target = $region12
      $region11: #{tpu_custom_call.1} parent=5 // pred_region
        %s257 = ssub.s32 %s23, 1
        // Predicated region
        $region13: #{tpu_custom_call.1} parent=11 // pred_check
          %p258 = pneg %p70
        $region14: #{tpu_custom_call.1} parent=11 // pred_check_branch
          %260 = sbr.rel (%p258) target = $region16
        $region15: #{tpu_custom_call.1} parent=11 // pred_region
          %s262 = ssub.s32 2048, 2048
          %263 = vsyncadd [#allocation6], %s262
          %s264 = sshll.u32 [#allocation5], 4
          %s265 = int_to_ptr.vmem [resolvable:$true] %s264
          %270 = dma.hbm_to_vmem [thread:$0]  %s1, 2048, %s265, [#allocation6], 128, 128, 8
        $region16: #{tpu_custom_call.1} parent=11 // pred_fallthru
          _
        // Predicated region
        $region17: #{tpu_custom_call.1} parent=11 // pred_check
          %p271 = pneg %p91
        $region18: #{tpu_custom_call.1} parent=11 // pred_check_branch
          %273 = sbr.rel (%p271) target = $region20
        $region19: #{tpu_custom_call.1} parent=11 // pred_region
          _
        $region20: #{tpu_custom_call.1} parent=11 // pred_fallthru
          _
        // Predicated region
        $region21: #{tpu_custom_call.1} parent=11 // pred_check
          %p274 = pneg %p112
        $region22: #{tpu_custom_call.1} parent=11 // pred_check_branch
          %276 = sbr.rel (%p274) target = $region24
        $region23: #{tpu_custom_call.1} parent=11 // pred_region
          %s278 = ssub.s32 4096, 4096
          %279 = vsyncadd [#allocation6], %s278
          %s280 = sshll.u32 [#allocation7], 4
          %s281 = int_to_ptr.vmem [resolvable:$true] %s280
          %286 = dma.hbm_to_vmem [thread:$0]  %s3, 4096, %s281, [#allocation6], 128, 128, 8
        $region24: #{tpu_custom_call.1} parent=11 // pred_fallthru
          _
        // Predicated region
        $region25: #{tpu_custom_call.1} parent=11 // pred_check
          %p287 = pneg %p133
        $region26: #{tpu_custom_call.1} parent=11 // pred_check_branch
          %289 = sbr.rel (%p287) target = $region28
        $region27: #{tpu_custom_call.1} parent=11 // pred_region
          _
        $region28: #{tpu_custom_call.1} parent=11 // pred_fallthru
          _
        // Predicated region
        $region29: #{tpu_custom_call.1} parent=11 // pred_check
          %p290 = pneg %p154
        $region30: #{tpu_custom_call.1} parent=11 // pred_check_branch
          %292 = sbr.rel (%p290) target = $region32
        $region31: #{tpu_custom_call.1} parent=11 // pred_region
          %s294 = ssub.s32 4096, 4096
          %295 = vsyncadd [#allocation9], %s294
          %s296 = sshll.u32 [#allocation8], 4
          %s297 = int_to_ptr.vmem [resolvable:$true] %s296
          %302 = dma.hbm_to_vmem [thread:$0]  %s5, 4096, %s297, [#allocation9], 128, 128, 8
        $region32: #{tpu_custom_call.1} parent=11 // pred_fallthru
          _
        // Predicated region
        $region33: #{tpu_custom_call.1} parent=11 // pred_check
          %p303 = pneg %p175
        $region34: #{tpu_custom_call.1} parent=11 // pred_check_branch
          %305 = sbr.rel (%p303) target = $region36
        $region35: #{tpu_custom_call.1} parent=11 // pred_region
          _
        $region36: #{tpu_custom_call.1} parent=11 // pred_fallthru
          _
        // Predicated region
        $region37: #{tpu_custom_call.1} parent=11 // pred_check
          %p306 = pneg %p196
        $region38: #{tpu_custom_call.1} parent=11 // pred_check_branch
          %308 = sbr.rel (%p306) target = $region40
        $region39: #{tpu_custom_call.1} parent=11 // pred_region
          %s310 = ssub.s32 2048, 2048
          %311 = vsyncadd [#allocation9], %s310
          %s312 = sshll.u32 [#allocation10], 4
          %s313 = int_to_ptr.vmem [resolvable:$true] %s312
          %318 = dma.hbm_to_vmem [thread:$0]  %s7, 2048, %s313, [#allocation9], 64, 64, 4
        $region40: #{tpu_custom_call.1} parent=11 // pred_fallthru
          _
        // Predicated region
        $region41: #{tpu_custom_call.1} parent=11 // pred_check
          %p319 = pneg %p217
        $region42: #{tpu_custom_call.1} parent=11 // pred_check_branch
          %321 = sbr.rel (%p319) target = $region44
        $region43: #{tpu_custom_call.1} parent=11 // pred_region
          _
        $region44: #{tpu_custom_call.1} parent=11 // pred_fallthru
          _
      $region12: #{tpu_custom_call.1} parent=5 // pred_fallthru
        _
      %p322 = scmp.lt.s32.totalorder %s23, 2
      // Predicated region
      $region45: #{tpu_custom_call.1} parent=5 // pred_check
        %p323 = pneg %p322
      $region46: #{tpu_custom_call.1} parent=5 // pred_check_branch
        %325 = sbr.rel (%p323) target = $region48
      $region47: #{tpu_custom_call.1} parent=5 // pred_region
        // Predicated region
        $region49: #{tpu_custom_call.1} parent=47 // pred_check
          %p326 = pneg %p43
        $region50: #{tpu_custom_call.1} parent=47 // pred_check_branch
          %328 = sbr.rel (%p326) target = $region52
        $region51: #{tpu_custom_call.1} parent=47 // pred_region
          %s329 = sand.u32 %s33, 1
          %s330 = scalar_lea.sflag [#allocation3], %s329
          %s331 = sand.u32 %s33, 1
          %s332 = smul.addr %s331, 64
          %s333 = scalar_lea.vmem [#allocation2], %s332
          %s334 = smul.u32 16, %s23
          %s336 = ssub.s32 1024, 1024
          %337 = vsyncadd %s330, %s336
          %s338 = smul.addr %s334, 64
          %s339 = scalar_lea.hbm %s0, %s338
          %s340 = sshll.u32 %s333, 4
          %s341 = int_to_ptr.vmem [resolvable:$true] %s340
          %346 = dma.hbm_to_vmem [thread:$0]  %s339, 1024, %s341, %s330, 64, 64, 4
        $region52: #{tpu_custom_call.1} parent=47 // pred_fallthru
          _
      $region48: #{tpu_custom_call.1} parent=5 // pred_fallthru
        _
      %p347 = scmp.le.s32.totalorder 1, %s23
      %p348 = scmp.lt.s32.totalorder %s23, 3
      %p349 = pnand %p347, %p348
      %p350 = pneg %p349
      // Predicated region
      $region53: #{tpu_custom_call.1} parent=5 // pred_check
        _
      $region54: #{tpu_custom_call.1} parent=5 // pred_check_branch
        %352 = sbr.rel (%p349) target = $region56
      $region55: #{tpu_custom_call.1} parent=5 // pred_region
        %s353 = ssub.s32 %s23, 1
        %s354 = sand.u32 %s36, 1
        %s355 = scalar_lea.sflag [#allocation3], %s354
        %s356 = sand.u32 %s36, 1
        %s357 = smul.addr %s356, 64
        %s358 = scalar_lea.vmem [#allocation2], %s357
        // Predicated region
        $region57: #{tpu_custom_call.1} parent=55 // pred_check
          %p359 = pneg %p49
        $region58: #{tpu_custom_call.1} parent=55 // pred_check_branch
          %361 = sbr.rel (%p359) target = $region60
        $region59: #{tpu_custom_call.1} parent=55 // pred_region
          %362 = dma.done %s355, 1024
        $region60: #{tpu_custom_call.1} parent=55 // pred_fallthru
          _
        // Predicated region
        $region61: #{tpu_custom_call.1} parent=55 // pred_check
          %p363 = pneg %p70
        $region62: #{tpu_custom_call.1} parent=55 // pred_check_branch
          %365 = sbr.rel (%p363) target = $region64
        $region63: #{tpu_custom_call.1} parent=55 // pred_region
          %366 = dma.done [#allocation6], 2048
        $region64: #{tpu_custom_call.1} parent=55 // pred_fallthru
          _
        // Predicated region
        $region65: #{tpu_custom_call.1} parent=55 // pred_check
          %p367 = pneg %p112
        $region66: #{tpu_custom_call.1} parent=55 // pred_check_branch
          %369 = sbr.rel (%p367) target = $region68
        $region67: #{tpu_custom_call.1} parent=55 // pred_region
          %370 = dma.done [#allocation6], 4096
        $region68: #{tpu_custom_call.1} parent=55 // pred_fallthru
          _
        // Predicated region
        $region69: #{tpu_custom_call.1} parent=55 // pred_check
          %p371 = pneg %p154
        $region70: #{tpu_custom_call.1} parent=55 // pred_check_branch
          %373 = sbr.rel (%p371) target = $region72
        $region71: #{tpu_custom_call.1} parent=55 // pred_region
          %374 = dma.done [#allocation9], 4096
        $region72: #{tpu_custom_call.1} parent=55 // pred_fallthru
          _
        // Predicated region
        $region73: #{tpu_custom_call.1} parent=55 // pred_check
          %p375 = pneg %p196
        $region74: #{tpu_custom_call.1} parent=55 // pred_check_branch
          %377 = sbr.rel (%p375) target = $region76
        $region75: #{tpu_custom_call.1} parent=55 // pred_region
          %378 = dma.done [#allocation9], 2048
        $region76: #{tpu_custom_call.1} parent=55 // pred_fallthru
          _
        %s379 = sand.u32 %s36, 1
        %s380 = scalar_lea.sflag [#allocation3], %s379
        %s381 = sand.u32 %s36, 1
        %s382 = smul.addr %s381, 64
        %s383 = scalar_lea.vmem [#allocation2], %s382
        %p384 = pneg %p49
        %p385 = pneg %p46
        %p386 = pneg %p70
        %p387 = pneg %p67
        %p388 = pneg %p91
        %p389 = pneg %p88
        %p390 = pneg %p112
        %p391 = pneg %p109
        %p392 = pneg %p133
        %p393 = pneg %p130
        %p394 = pneg %p154
        %p395 = pneg %p151
        %p396 = pneg %p175
        %p397 = pneg %p172
        %p398 = pneg %p196
        %p399 = pneg %p193
        %p400 = pneg %p217
        %p401 = pneg %p214
        %p402 = pneg %p243
        %p403 = pneg %p240
        %s404 = sand.u32 %s230, 1
        %s405 = scalar_lea.sflag [#allocation4], %s404
        %s406 = sand.u32 %s230, 1
        %s407 = smul.addr %s406, 128
        %s408 = scalar_lea.vmem [#allocation11], %s407
        %s409 = smul.u32 16, %s28
        %s410 = smul.u32 16, %s28
        %v412 = vld [vmem:[%s358] sm:$0xf]
        %v413 = vld [vmem:[%s358 + $0x4] sm:$0xf]
        %v414 = vld [vmem:[%s358 + $0x8] sm:$0xf]
        %v415 = vld [vmem:[%s358 + $0xc] sm:$0xf]
        %v416 = vld [vmem:[%s358 + $0x10] sm:$0xf]
        %v417 = vld [vmem:[%s358 + $0x14] sm:$0xf]
        %v418 = vld [vmem:[%s358 + $0x18] sm:$0xf]
        %v419 = vld [vmem:[%s358 + $0x1c] sm:$0xf]
        %v420 = vld [vmem:[%s358 + $0x20] sm:$0xf]
        %v421 = vld [vmem:[%s358 + $0x24] sm:$0xf]
        %v422 = vld [vmem:[%s358 + $0x28] sm:$0xf]
        %v423 = vld [vmem:[%s358 + $0x2c] sm:$0xf]
        %v424 = vld [vmem:[%s358 + $0x30] sm:$0xf]
        %v425 = vld [vmem:[%s358 + $0x34] sm:$0xf]
        %v426 = vld [vmem:[%s358 + $0x38] sm:$0xf]
        %v427 = vld [vmem:[%s358 + $0x3c] sm:$0xf]
        %v428 = vld [vmem:[#allocation5] sm:$0xff]
        %v429 = vld [vmem:[#allocation5 + $0x8] sm:$0xff]
        %v430 = vld [vmem:[#allocation5 + $0x10] sm:$0xff]
        %v431 = vld [vmem:[#allocation5 + $0x18] sm:$0xff]
        %v432 = vld [vmem:[#allocation5 + $0x20] sm:$0xff]
        %v433 = vld [vmem:[#allocation5 + $0x28] sm:$0xff]
        %v434 = vld [vmem:[#allocation5 + $0x30] sm:$0xff]
        %v435 = vld [vmem:[#allocation5 + $0x38] sm:$0xff]
        %v436 = vld [vmem:[#allocation5 + $0x40] sm:$0xff]
        %v437 = vld [vmem:[#allocation5 + $0x48] sm:$0xff]
        %v438 = vld [vmem:[#allocation5 + $0x50] sm:$0xff]
        %v439 = vld [vmem:[#allocation5 + $0x58] sm:$0xff]
        %v440 = vld [vmem:[#allocation5 + $0x60] sm:$0xff]
        %v441 = vld [vmem:[#allocation5 + $0x68] sm:$0xff]
        %v442 = vld [vmem:[#allocation5 + $0x70] sm:$0xff]
        %v443 = vld [vmem:[#allocation5 + $0x78] sm:$0xff]
        %v444 = vld [vmem:[%s2] sm:$0x3]
        %v446 = vlaneseq
        %v447 = vshrl.u32 %v446, 7
        %v448 = vsub.s32 0, %v447
        %v449 = vrot.slane %v444, %v448
        %v450 = vlaneseq
        %v451 = vshrl.u32 %v450, 7
        %v452 = vsub.s32 1, %v451
        %v453 = vrot.slane %v444, %v452
        %v472 = vunpack.c.l.b16 %v412
        %v473 = vunpack.c.l.b16 %v413
        %v474 = vunpack.c.l.b16 %v414
        %v475 = vunpack.c.l.b16 %v415
        %v476 = vunpack.c.l.b16 %v416
        %v477 = vunpack.c.l.b16 %v417
        %v478 = vunpack.c.l.b16 %v418
        %v479 = vunpack.c.l.b16 %v419
        %v480 = vunpack.c.l.b16 %v420
        %v481 = vunpack.c.l.b16 %v421
        %v482 = vunpack.c.l.b16 %v422
        %v483 = vunpack.c.l.b16 %v423
        %v484 = vunpack.c.l.b16 %v424
        %v485 = vunpack.c.l.b16 %v425
        %v486 = vunpack.c.l.b16 %v426
        %v487 = vunpack.c.l.b16 %v427
        %v488 = vpack.c.b16 %v473, %v472
        %v489 = vpack.c.b16 %v475, %v474
        %v490 = vpack.c.b16 %v477, %v476
        %v491 = vpack.c.b16 %v479, %v478
        %v492 = vpack.c.b16 %v481, %v480
        %v493 = vpack.c.b16 %v483, %v482
        %v494 = vpack.c.b16 %v485, %v484
        %v495 = vpack.c.b16 %v487, %v486
        %v520 = vunpack.c.l.b16 %v428
        %v521 = vunpack.c.h.b16 %v428
        %v522 = vunpack.c.l.b16 %v429
        %v523 = vunpack.c.h.b16 %v429
        %v524 = vunpack.c.l.b16 %v430
        %v525 = vunpack.c.h.b16 %v430
        %v526 = vunpack.c.l.b16 %v431
        %v527 = vunpack.c.h.b16 %v431
        %v528 = vunpack.c.l.b16 %v432
        %v529 = vunpack.c.h.b16 %v432
        %v530 = vunpack.c.l.b16 %v433
        %v531 = vunpack.c.h.b16 %v433
        %v532 = vunpack.c.l.b16 %v434
        %v533 = vunpack.c.h.b16 %v434
        %v534 = vunpack.c.l.b16 %v435
        %v535 = vunpack.c.h.b16 %v435
        %v536 = vunpack.c.l.b16 %v436
        %v537 = vunpack.c.h.b16 %v436
        %v538 = vunpack.c.l.b16 %v437
        %v539 = vunpack.c.h.b16 %v437
        %v540 = vunpack.c.l.b16 %v438
        %v541 = vunpack.c.h.b16 %v438
        %v542 = vunpack.c.l.b16 %v439
        %v543 = vunpack.c.h.b16 %v439
        %v544 = vunpack.c.l.b16 %v440
        %v545 = vunpack.c.h.b16 %v440
        %v546 = vunpack.c.l.b16 %v441
        %v547 = vunpack.c.h.b16 %v441
        %v548 = vunpack.c.l.b16 %v442
        %v549 = vunpack.c.h.b16 %v442
        %v550 = vunpack.c.l.b16 %v443
        %v551 = vunpack.c.h.b16 %v443
        %v552 = vpack.c.b16 %v522, %v520
        %v553 = vpack.c.b16 %v523, %v521
        %v554 = vpack.c.b16 %v526, %v524
        %v555 = vpack.c.b16 %v527, %v525
        %v556 = vpack.c.b16 %v530, %v528
        %v557 = vpack.c.b16 %v531, %v529
        %v558 = vpack.c.b16 %v534, %v532
        %v559 = vpack.c.b16 %v535, %v533
        %v560 = vpack.c.b16 %v538, %v536
        %v561 = vpack.c.b16 %v539, %v537
        %v562 = vpack.c.b16 %v542, %v540
        %v563 = vpack.c.b16 %v543, %v541
        %v564 = vpack.c.b16 %v546, %v544
        %v565 = vpack.c.b16 %v547, %v545
        %v566 = vpack.c.b16 %v550, %v548
        %v567 = vpack.c.b16 %v551, %v549
        %584 = vmatprep.subr.bf16.mxu0 %v567
        %585 = vmatpush1.bf16.msra.mxu0 %v566
        %586 = vmatprep.subr.bf16.mxu0 %v565
        %587 = vmatpush1.bf16.msra.mxu0 %v564
        %588 = vmatprep.subr.bf16.mxu0 %v563
        %589 = vmatpush1.bf16.msra.mxu0 %v562
        %590 = vmatprep.subr.bf16.mxu0 %v561
        %591 = vmatpush1.bf16.msra.mxu0 %v560
        %592 = vmatprep.subr.bf16.mxu0 %v559
        %593 = vmatpush1.bf16.msra.mxu0 %v558
        %594 = vmatprep.subr.bf16.mxu0 %v557
        %595 = vmatpush1.bf16.msra.mxu0 %v556
        %596 = vmatprep.subr.bf16.mxu0 %v555
        %597 = vmatpush1.bf16.msra.mxu0 %v554
        %598 = vmatprep.subr.bf16.mxu0 %v553
        %599 = vmatpush1.bf16.msra.mxu0 %v552
        %600 = vmatprep.subr.bf16.mxu0 0
        %601 = vmatpush2.bf16.msra.mxu0 0
        %602 = vmatprep.subr.bf16.mxu0 0
        %603 = vmatpush2.bf16.msra.mxu0 0
        %604 = vmatprep.subr.bf16.mxu0 0
        %605 = vmatpush2.bf16.msra.mxu0 0
        %606 = vmatprep.subr.bf16.mxu0 0
        %607 = vmatpush2.bf16.msra.mxu0 0
        %608 = vmatprep.subr.bf16.mxu0 0
        %609 = vmatpush2.bf16.msra.mxu0 0
        %610 = vmatprep.subr.bf16.mxu0 0
        %611 = vmatpush2.bf16.msra.mxu0 0
        %612 = vmatprep.subr.bf16.mxu0 0
        %613 = vmatpush2.bf16.msra.mxu0 0
        %614 = vmatprep.subr.bf16.mxu0 0
        %615 = vmatpush2.bf16.msra.mxu0 0
        %616 = vmatprep.mubr.bf16.mxu0 0
        %617 = vmatmul.mubr.bf16.gmra.mxu0 %v488
        %v618 = vpop.f32.mrf.mxu0
        %v619 = vadd.f32 %v449, %v618
        %v620 = vpop.f32.mrf.mxu0
        %v621 = vadd.f32 %v453, %v620
        %v622 = vpop.f32.mrf.mxu0
        %v623 = vadd.f32 %v449, %v622
        %v624 = vpop.f32.mrf.mxu0
        %v625 = vadd.f32 %v453, %v624
        %626 = vmatprep.mubr.bf16.mxu0 0
        %627 = vmatmul.mubr.bf16.gmra.mxu0 %v489
        %v628 = vpop.f32.mrf.mxu0
        %v629 = vadd.f32 %v449, %v628
        %v630 = vpop.f32.mrf.mxu0
        %v631 = vadd.f32 %v453, %v630
        %v632 = vpop.f32.mrf.mxu0
        %v633 = vadd.f32 %v449, %v632
        %v634 = vpop.f32.mrf.mxu0
        %v635 = vadd.f32 %v453, %v634
        %636 = vmatprep.mubr.bf16.mxu0 0
        %637 = vmatmul.mubr.bf16.gmra.mxu0 %v490
        %v638 = vpop.f32.mrf.mxu0
        %v639 = vadd.f32 %v449, %v638
        %v640 = vpop.f32.mrf.mxu0
        %v641 = vadd.f32 %v453, %v640
        %v642 = vpop.f32.mrf.mxu0
        %v643 = vadd.f32 %v449, %v642
        %v644 = vpop.f32.mrf.mxu0
        %v645 = vadd.f32 %v453, %v644
        %646 = vmatprep.mubr.bf16.mxu0 0
        %647 = vmatmul.mubr.bf16.gmra.mxu0 %v491
        %v648 = vpop.f32.mrf.mxu0
        %v649 = vadd.f32 %v449, %v648
        %v650 = vpop.f32.mrf.mxu0
        %v651 = vadd.f32 %v453, %v650
        %v652 = vpop.f32.mrf.mxu0
        %v653 = vadd.f32 %v449, %v652
        %v654 = vpop.f32.mrf.mxu0
        %v655 = vadd.f32 %v453, %v654
        %656 = vmatprep.mubr.bf16.mxu0 0
        %657 = vmatmul.mubr.bf16.gmra.mxu0 %v492
        %v658 = vpop.f32.mrf.mxu0
        %v659 = vadd.f32 %v449, %v658
        %v660 = vpop.f32.mrf.mxu0
        %v661 = vadd.f32 %v453, %v660
        %v662 = vpop.f32.mrf.mxu0
        %v663 = vadd.f32 %v449, %v662
        %v664 = vpop.f32.mrf.mxu0
        %v665 = vadd.f32 %v453, %v664
        %666 = vmatprep.mubr.bf16.mxu0 0
        %667 = vmatmul.mubr.bf16.gmra.mxu0 %v493
        %v668 = vpop.f32.mrf.mxu0
        %v669 = vadd.f32 %v449, %v668
        %v670 = vpop.f32.mrf.mxu0
        %v671 = vadd.f32 %v453, %v670
        %v672 = vpop.f32.mrf.mxu0
        %v673 = vadd.f32 %v449, %v672
        %v674 = vpop.f32.mrf.mxu0
        %v675 = vadd.f32 %v453, %v674
        %676 = vmatprep.mubr.bf16.mxu0 0
        %677 = vmatmul.mubr.bf16.gmra.mxu0 %v494
        %v678 = vpop.f32.mrf.mxu0
        %v679 = vadd.f32 %v449, %v678
        %v680 = vpop.f32.mrf.mxu0
        %v681 = vadd.f32 %v453, %v680
        %v682 = vpop.f32.mrf.mxu0
        %v683 = vadd.f32 %v449, %v682
        %v684 = vpop.f32.mrf.mxu0
        %v685 = vadd.f32 %v453, %v684
        %686 = vmatprep.mubr.bf16.mxu0 0
        %687 = vmatmul.mubr.bf16.gmra.mxu0 %v495
        %v688 = vpop.f32.mrf.mxu0
        %v689 = vadd.f32 %v449, %v688
        %v690 = vpop.f32.mrf.mxu0
        %v691 = vadd.f32 %v453, %v690
        %v692 = vpop.f32.mrf.mxu0
        %v693 = vadd.f32 %v449, %v692
        %v694 = vpop.f32.mrf.mxu0
        %v695 = vadd.f32 %v453, %v694
        %696 = vdwg.mxu0
        %v697 = vmax.f32 %v619, 0.0
        %v698 = vmax.f32 %v621, 0.0
        %v699 = vmax.f32 %v623, 0.0
        %v700 = vmax.f32 %v625, 0.0
        %v701 = vmax.f32 %v629, 0.0
        %v702 = vmax.f32 %v631, 0.0
        %v703 = vmax.f32 %v633, 0.0
        %v704 = vmax.f32 %v635, 0.0
        %v705 = vmax.f32 %v639, 0.0
        %v706 = vmax.f32 %v641, 0.0
        %v707 = vmax.f32 %v643, 0.0
        %v708 = vmax.f32 %v645, 0.0
        %v709 = vmax.f32 %v649, 0.0
        %v710 = vmax.f32 %v651, 0.0
        %v711 = vmax.f32 %v653, 0.0
        %v712 = vmax.f32 %v655, 0.0
        %v713 = vmax.f32 %v659, 0.0
        %v714 = vmax.f32 %v661, 0.0
        %v715 = vmax.f32 %v663, 0.0
        %v716 = vmax.f32 %v665, 0.0
        %v717 = vmax.f32 %v669, 0.0
        %v718 = vmax.f32 %v671, 0.0
        %v719 = vmax.f32 %v673, 0.0
        %v720 = vmax.f32 %v675, 0.0
        %v721 = vmax.f32 %v679, 0.0
        %v722 = vmax.f32 %v681, 0.0
        %v723 = vmax.f32 %v683, 0.0
        %v724 = vmax.f32 %v685, 0.0
        %v725 = vmax.f32 %v689, 0.0
        %v726 = vmax.f32 %v691, 0.0
        %v727 = vmax.f32 %v693, 0.0
        %v728 = vmax.f32 %v695, 0.0
        %v729 = vpack.c.bf16 %v699, %v697
        %v730 = vpack.c.bf16 %v700, %v698
        %v731 = vpack.c.bf16 %v703, %v701
        %v732 = vpack.c.bf16 %v704, %v702
        %v733 = vpack.c.bf16 %v707, %v705
        %v734 = vpack.c.bf16 %v708, %v706
        %v735 = vpack.c.bf16 %v711, %v709
        %v736 = vpack.c.bf16 %v712, %v710
        %v737 = vpack.c.bf16 %v715, %v713
        %v738 = vpack.c.bf16 %v716, %v714
        %v739 = vpack.c.bf16 %v719, %v717
        %v740 = vpack.c.bf16 %v720, %v718
        %v741 = vpack.c.bf16 %v723, %v721
        %v742 = vpack.c.bf16 %v724, %v722
        %v743 = vpack.c.bf16 %v727, %v725
        %v744 = vpack.c.bf16 %v728, %v726
        %v745 = vld [vmem:[#allocation7] sm:$0xff]
        %v746 = vld [vmem:[#allocation7 + $0x8] sm:$0xff]
        %v747 = vld [vmem:[#allocation7 + $0x10] sm:$0xff]
        %v748 = vld [vmem:[#allocation7 + $0x18] sm:$0xff]
        %v749 = vld [vmem:[#allocation7 + $0x20] sm:$0xff]
        %v750 = vld [vmem:[#allocation7 + $0x28] sm:$0xff]
        %v751 = vld [vmem:[#allocation7 + $0x30] sm:$0xff]
        %v752 = vld [vmem:[#allocation7 + $0x38] sm:$0xff]
        %v753 = vld [vmem:[#allocation7 + $0x40] sm:$0xff]
        %v754 = vld [vmem:[#allocation7 + $0x48] sm:$0xff]
        %v755 = vld [vmem:[#allocation7 + $0x50] sm:$0xff]
        %v756 = vld [vmem:[#allocation7 + $0x58] sm:$0xff]
        %v757 = vld [vmem:[#allocation7 + $0x60] sm:$0xff]
        %v758 = vld [vmem:[#allocation7 + $0x68] sm:$0xff]
        %v759 = vld [vmem:[#allocation7 + $0x70] sm:$0xff]
        %v760 = vld [vmem:[#allocation7 + $0x78] sm:$0xff]
        %v761 = vld [vmem:[#allocation7 + $0x80] sm:$0xff]
        %v762 = vld [vmem:[#allocation7 + $0x88] sm:$0xff]
        %v763 = vld [vmem:[#allocation7 + $0x90] sm:$0xff]
        %v764 = vld [vmem:[#allocation7 + $0x98] sm:$0xff]
        %v765 = vld [vmem:[#allocation7 + $0xa0] sm:$0xff]
        %v766 = vld [vmem:[#allocation7 + $0xa8] sm:$0xff]
        %v767 = vld [vmem:[#allocation7 + $0xb0] sm:$0xff]
        %v768 = vld [vmem:[#allocation7 + $0xb8] sm:$0xff]
        %v769 = vld [vmem:[#allocation7 + $0xc0] sm:$0xff]
        %v770 = vld [vmem:[#allocation7 + $0xc8] sm:$0xff]
        %v771 = vld [vmem:[#allocation7 + $0xd0] sm:$0xff]
        %v772 = vld [vmem:[#allocation7 + $0xd8] sm:$0xff]
        %v773 = vld [vmem:[#allocation7 + $0xe0] sm:$0xff]
        %v774 = vld [vmem:[#allocation7 + $0xe8] sm:$0xff]
        %v775 = vld [vmem:[#allocation7 + $0xf0] sm:$0xff]
        %v776 = vld [vmem:[#allocation7 + $0xf8] sm:$0xff]
        %v777 = vld [vmem:[%s4] sm:$0x3]
        %v779 = vlaneseq
        %v780 = vshrl.u32 %v779, 7
        %v781 = vsub.s32 0, %v780
        %v782 = vrot.slane %v777, %v781
        %v783 = vlaneseq
        %v784 = vshrl.u32 %v783, 7
        %v785 = vsub.s32 1, %v784
        %v786 = vrot.slane %v777, %v785
        %v821 = vunpack.c.l.b16 %v745
        %v822 = vunpack.c.h.b16 %v745
        %v823 = vunpack.c.l.b16 %v746
        %v824 = vunpack.c.h.b16 %v746
        %v825 = vunpack.c.l.b16 %v747
        %v826 = vunpack.c.h.b16 %v747
        %v827 = vunpack.c.l.b16 %v748
        %v828 = vunpack.c.h.b16 %v748
        %v829 = vunpack.c.l.b16 %v749
        %v830 = vunpack.c.h.b16 %v749
        %v831 = vunpack.c.l.b16 %v750
        %v832 = vunpack.c.h.b16 %v750
        %v833 = vunpack.c.l.b16 %v751
        %v834 = vunpack.c.h.b16 %v751
        %v835 = vunpack.c.l.b16 %v752
        %v836 = vunpack.c.h.b16 %v752
        %v837 = vunpack.c.l.b16 %v753
        %v838 = vunpack.c.h.b16 %v753
        %v839 = vunpack.c.l.b16 %v754
        %v840 = vunpack.c.h.b16 %v754
        %v841 = vunpack.c.l.b16 %v755
        %v842 = vunpack.c.h.b16 %v755
        %v843 = vunpack.c.l.b16 %v756
        %v844 = vunpack.c.h.b16 %v756
        %v845 = vunpack.c.l.b16 %v757
        %v846 = vunpack.c.h.b16 %v757
        %v847 = vunpack.c.l.b16 %v758
        %v848 = vunpack.c.h.b16 %v758
        %v849 = vunpack.c.l.b16 %v759
        %v850 = vunpack.c.h.b16 %v759
        %v851 = vunpack.c.l.b16 %v760
        %v852 = vunpack.c.h.b16 %v760
        %v853 = vunpack.c.l.b16 %v761
        %v854 = vunpack.c.h.b16 %v761
        %v855 = vunpack.c.l.b16 %v762
        %v856 = vunpack.c.h.b16 %v762
        %v857 = vunpack.c.l.b16 %v763
        %v858 = vunpack.c.h.b16 %v763
        %v859 = vunpack.c.l.b16 %v764
        %v860 = vunpack.c.h.b16 %v764
        %v861 = vunpack.c.l.b16 %v765
        %v862 = vunpack.c.h.b16 %v765
        %v863 = vunpack.c.l.b16 %v766
        %v864 = vunpack.c.h.b16 %v766
        %v865 = vunpack.c.l.b16 %v767
        %v866 = vunpack.c.h.b16 %v767
        %v867 = vunpack.c.l.b16 %v768
        %v868 = vunpack.c.h.b16 %v768
        %v869 = vunpack.c.l.b16 %v769
        %v870 = vunpack.c.h.b16 %v769
        %v871 = vunpack.c.l.b16 %v770
        %v872 = vunpack.c.h.b16 %v770
        %v873 = vunpack.c.l.b16 %v771
        %v874 = vunpack.c.h.b16 %v771
        %v875 = vunpack.c.l.b16 %v772
        %v876 = vunpack.c.h.b16 %v772
        %v877 = vunpack.c.l.b16 %v773
        %v878 = vunpack.c.h.b16 %v773
        %v879 = vunpack.c.l.b16 %v774
        %v880 = vunpack.c.h.b16 %v774
        %v881 = vunpack.c.l.b16 %v775
        %v882 = vunpack.c.h.b16 %v775
        %v883 = vunpack.c.l.b16 %v776
        %v884 = vunpack.c.h.b16 %v776
        %v885 = vpack.c.b16 %v823, %v821
        %v886 = vpack.c.b16 %v824, %v822
        %v887 = vpack.c.b16 %v827, %v825
        %v888 = vpack.c.b16 %v828, %v826
        %v889 = vpack.c.b16 %v831, %v829
        %v890 = vpack.c.b16 %v832, %v830
        %v891 = vpack.c.b16 %v835, %v833
        %v892 = vpack.c.b16 %v836, %v834
        %v893 = vpack.c.b16 %v839, %v837
        %v894 = vpack.c.b16 %v840, %v838
        %v895 = vpack.c.b16 %v843, %v841
        %v896 = vpack.c.b16 %v844, %v842
        %v897 = vpack.c.b16 %v847, %v845
        %v898 = vpack.c.b16 %v848, %v846
        %v899 = vpack.c.b16 %v851, %v849
        %v900 = vpack.c.b16 %v852, %v850
        %v901 = vpack.c.b16 %v855, %v853
        %v902 = vpack.c.b16 %v856, %v854
        %v903 = vpack.c.b16 %v859, %v857
        %v904 = vpack.c.b16 %v860, %v858
        %v905 = vpack.c.b16 %v863, %v861
        %v906 = vpack.c.b16 %v864, %v862
        %v907 = vpack.c.b16 %v867, %v865
        %v908 = vpack.c.b16 %v868, %v866
        %v909 = vpack.c.b16 %v871, %v869
        %v910 = vpack.c.b16 %v872, %v870
        %v911 = vpack.c.b16 %v875, %v873
        %v912 = vpack.c.b16 %v876, %v874
        %v913 = vpack.c.b16 %v879, %v877
        %v914 = vpack.c.b16 %v880, %v878
        %v915 = vpack.c.b16 %v883, %v881
        %v916 = vpack.c.b16 %v884, %v882
        %949 = vmatprep.subr.bf16.mxu0 %v900
        %950 = vmatpush1.bf16.msra.mxu0 %v899
        %951 = vmatprep.subr.bf16.mxu0 %v898
        %952 = vmatpush1.bf16.msra.mxu0 %v897
        %953 = vmatprep.subr.bf16.mxu0 %v896
        %954 = vmatpush1.bf16.msra.mxu0 %v895
        %955 = vmatprep.subr.bf16.mxu0 %v894
        %956 = vmatpush1.bf16.msra.mxu0 %v893
        %957 = vmatprep.subr.bf16.mxu0 %v892
        %958 = vmatpush1.bf16.msra.mxu0 %v891
        %959 = vmatprep.subr.bf16.mxu0 %v890
        %960 = vmatpush1.bf16.msra.mxu0 %v889
        %961 = vmatprep.subr.bf16.mxu0 %v888
        %962 = vmatpush1.bf16.msra.mxu0 %v887
        %963 = vmatprep.subr.bf16.mxu0 %v886
        %964 = vmatpush1.bf16.msra.mxu0 %v885
        %965 = vmatprep.subr.bf16.mxu0 %v916
        %966 = vmatpush2.bf16.msra.mxu0 %v915
        %967 = vmatprep.subr.bf16.mxu0 %v914
        %968 = vmatpush2.bf16.msra.mxu0 %v913
        %969 = vmatprep.subr.bf16.mxu0 %v912
        %970 = vmatpush2.bf16.msra.mxu0 %v911
        %971 = vmatprep.subr.bf16.mxu0 %v910
        %972 = vmatpush2.bf16.msra.mxu0 %v909
        %973 = vmatprep.subr.bf16.mxu0 %v908
        %974 = vmatpush2.bf16.msra.mxu0 %v907
        %975 = vmatprep.subr.bf16.mxu0 %v906
        %976 = vmatpush2.bf16.msra.mxu0 %v905
        %977 = vmatprep.subr.bf16.mxu0 %v904
        %978 = vmatpush2.bf16.msra.mxu0 %v903
        %979 = vmatprep.subr.bf16.mxu0 %v902
        %980 = vmatpush2.bf16.msra.mxu0 %v901
        %981 = vmatprep.mubr.bf16.mxu0 %v730
        %982 = vmatmul.mubr.bf16.gmra.mxu0 %v729
        %v983 = vpop.f32.mrf.mxu0
        %v984 = vadd.f32 %v782, %v983
        %v985 = vpop.f32.mrf.mxu0
        %v986 = vadd.f32 %v786, %v985
        %v987 = vpop.f32.mrf.mxu0
        %v988 = vadd.f32 %v782, %v987
        %v989 = vpop.f32.mrf.mxu0
        %v990 = vadd.f32 %v786, %v989
        %991 = vmatprep.mubr.bf16.mxu0 %v732
        %992 = vmatmul.mubr.bf16.gmra.mxu0 %v731
        %v993 = vpop.f32.mrf.mxu0
        %v994 = vadd.f32 %v782, %v993
        %v995 = vpop.f32.mrf.mxu0
        %v996 = vadd.f32 %v786, %v995
        %v997 = vpop.f32.mrf.mxu0
        %v998 = vadd.f32 %v782, %v997
        %v999 = vpop.f32.mrf.mxu0
        %v1000 = vadd.f32 %v786, %v999
        %1001 = vmatprep.mubr.bf16.mxu0 %v734
        %1002 = vmatmul.mubr.bf16.gmra.mxu0 %v733
        %v1003 = vpop.f32.mrf.mxu0
        %v1004 = vadd.f32 %v782, %v1003
        %v1005 = vpop.f32.mrf.mxu0
        %v1006 = vadd.f32 %v786, %v1005
        %v1007 = vpop.f32.mrf.mxu0
        %v1008 = vadd.f32 %v782, %v1007
        %v1009 = vpop.f32.mrf.mxu0
        %v1010 = vadd.f32 %v786, %v1009
        %1011 = vmatprep.mubr.bf16.mxu0 %v736
        %1012 = vmatmul.mubr.bf16.gmra.mxu0 %v735
        %v1013 = vpop.f32.mrf.mxu0
        %v1014 = vadd.f32 %v782, %v1013
        %v1015 = vpop.f32.mrf.mxu0
        %v1016 = vadd.f32 %v786, %v1015
        %v1017 = vpop.f32.mrf.mxu0
        %v1018 = vadd.f32 %v782, %v1017
        %v1019 = vpop.f32.mrf.mxu0
        %v1020 = vadd.f32 %v786, %v1019
        %1021 = vmatprep.mubr.bf16.mxu0 %v738
        %1022 = vmatmul.mubr.bf16.gmra.mxu0 %v737
        %v1023 = vpop.f32.mrf.mxu0
        %v1024 = vadd.f32 %v782, %v1023
        %v1025 = vpop.f32.mrf.mxu0
        %v1026 = vadd.f32 %v786, %v1025
        %v1027 = vpop.f32.mrf.mxu0
        %v1028 = vadd.f32 %v782, %v1027
        %v1029 = vpop.f32.mrf.mxu0
        %v1030 = vadd.f32 %v786, %v1029
        %1031 = vmatprep.mubr.bf16.mxu0 %v740
        %1032 = vmatmul.mubr.bf16.gmra.mxu0 %v739
        %v1033 = vpop.f32.mrf.mxu0
        %v1034 = vadd.f32 %v782, %v1033
        %v1035 = vpop.f32.mrf.mxu0
        %v1036 = vadd.f32 %v786, %v1035
        %v1037 = vpop.f32.mrf.mxu0
        %v1038 = vadd.f32 %v782, %v1037
        %v1039 = vpop.f32.mrf.mxu0
        %v1040 = vadd.f32 %v786, %v1039
        %1041 = vmatprep.mubr.bf16.mxu0 %v742
        %1042 = vmatmul.mubr.bf16.gmra.mxu0 %v741
        %v1043 = vpop.f32.mrf.mxu0
        %v1044 = vadd.f32 %v782, %v1043
        %v1045 = vpop.f32.mrf.mxu0
        %v1046 = vadd.f32 %v786, %v1045
        %v1047 = vpop.f32.mrf.mxu0
        %v1048 = vadd.f32 %v782, %v1047
        %v1049 = vpop.f32.mrf.mxu0
        %v1050 = vadd.f32 %v786, %v1049
        %1051 = vmatprep.mubr.bf16.mxu0 %v744
        %1052 = vmatmul.mubr.bf16.gmra.mxu0 %v743
        %v1053 = vpop.f32.mrf.mxu0
        %v1054 = vadd.f32 %v782, %v1053
        %v1055 = vpop.f32.mrf.mxu0
        %v1056 = vadd.f32 %v786, %v1055
        %v1057 = vpop.f32.mrf.mxu0
        %v1058 = vadd.f32 %v782, %v1057
        %v1059 = vpop.f32.mrf.mxu0
        %v1060 = vadd.f32 %v786, %v1059
        %1061 = vdwg.mxu0
        %v1062 = vmax.f32 %v984, 0.0
        %v1063 = vmax.f32 %v986, 0.0
        %v1064 = vmax.f32 %v988, 0.0
        %v1065 = vmax.f32 %v990, 0.0
        %v1066 = vmax.f32 %v994, 0.0
        %v1067 = vmax.f32 %v996, 0.0
        %v1068 = vmax.f32 %v998, 0.0
        %v1069 = vmax.f32 %v1000, 0.0
        %v1070 = vmax.f32 %v1004, 0.0
        %v1071 = vmax.f32 %v1006, 0.0
        %v1072 = vmax.f32 %v1008, 0.0
        %v1073 = vmax.f32 %v1010, 0.0
        %v1074 = vmax.f32 %v1014, 0.0
        %v1075 = vmax.f32 %v1016, 0.0
        %v1076 = vmax.f32 %v1018, 0.0
        %v1077 = vmax.f32 %v1020, 0.0
        %v1078 = vmax.f32 %v1024, 0.0
        %v1079 = vmax.f32 %v1026, 0.0
        %v1080 = vmax.f32 %v1028, 0.0
        %v1081 = vmax.f32 %v1030, 0.0
        %v1082 = vmax.f32 %v1034, 0.0
        %v1083 = vmax.f32 %v1036, 0.0
        %v1084 = vmax.f32 %v1038, 0.0
        %v1085 = vmax.f32 %v1040, 0.0
        %v1086 = vmax.f32 %v1044, 0.0
        %v1087 = vmax.f32 %v1046, 0.0
        %v1088 = vmax.f32 %v1048, 0.0
        %v1089 = vmax.f32 %v1050, 0.0
        %v1090 = vmax.f32 %v1054, 0.0
        %v1091 = vmax.f32 %v1056, 0.0
        %v1092 = vmax.f32 %v1058, 0.0
        %v1093 = vmax.f32 %v1060, 0.0
        %v1094 = vpack.c.bf16 %v1064, %v1062
        %v1095 = vpack.c.bf16 %v1065, %v1063
        %v1096 = vpack.c.bf16 %v1068, %v1066
        %v1097 = vpack.c.bf16 %v1069, %v1067
        %v1098 = vpack.c.bf16 %v1072, %v1070
        %v1099 = vpack.c.bf16 %v1073, %v1071
        %v1100 = vpack.c.bf16 %v1076, %v1074
        %v1101 = vpack.c.bf16 %v1077, %v1075
        %v1102 = vpack.c.bf16 %v1080, %v1078
        %v1103 = vpack.c.bf16 %v1081, %v1079
        %v1104 = vpack.c.bf16 %v1084, %v1082
        %v1105 = vpack.c.bf16 %v1085, %v1083
        %v1106 = vpack.c.bf16 %v1088, %v1086
        %v1107 = vpack.c.bf16 %v1089, %v1087
        %v1108 = vpack.c.bf16 %v1092, %v1090
        %v1109 = vpack.c.bf16 %v1093, %v1091
        %v1110 = vld [vmem:[#allocation8] sm:$0xff]
        %v1111 = vld [vmem:[#allocation8 + $0x8] sm:$0xff]
        %v1112 = vld [vmem:[#allocation8 + $0x10] sm:$0xff]
        %v1113 = vld [vmem:[#allocation8 + $0x18] sm:$0xff]
        %v1114 = vld [vmem:[#allocation8 + $0x20] sm:$0xff]
        %v1115 = vld [vmem:[#allocation8 + $0x28] sm:$0xff]
        %v1116 = vld [vmem:[#allocation8 + $0x30] sm:$0xff]
        %v1117 = vld [vmem:[#allocation8 + $0x38] sm:$0xff]
        %v1118 = vld [vmem:[#allocation8 + $0x40] sm:$0xff]
        %v1119 = vld [vmem:[#allocation8 + $0x48] sm:$0xff]
        %v1120 = vld [vmem:[#allocation8 + $0x50] sm:$0xff]
        %v1121 = vld [vmem:[#allocation8 + $0x58] sm:$0xff]
        %v1122 = vld [vmem:[#allocation8 + $0x60] sm:$0xff]
        %v1123 = vld [vmem:[#allocation8 + $0x68] sm:$0xff]
        %v1124 = vld [vmem:[#allocation8 + $0x70] sm:$0xff]
        %v1125 = vld [vmem:[#allocation8 + $0x78] sm:$0xff]
        %v1126 = vld [vmem:[#allocation8 + $0x80] sm:$0xff]
        %v1127 = vld [vmem:[#allocation8 + $0x88] sm:$0xff]
        %v1128 = vld [vmem:[#allocation8 + $0x90] sm:$0xff]
        %v1129 = vld [vmem:[#allocation8 + $0x98] sm:$0xff]
        %v1130 = vld [vmem:[#allocation8 + $0xa0] sm:$0xff]
        %v1131 = vld [vmem:[#allocation8 + $0xa8] sm:$0xff]
        %v1132 = vld [vmem:[#allocation8 + $0xb0] sm:$0xff]
        %v1133 = vld [vmem:[#allocation8 + $0xb8] sm:$0xff]
        %v1134 = vld [vmem:[#allocation8 + $0xc0] sm:$0xff]
        %v1135 = vld [vmem:[#allocation8 + $0xc8] sm:$0xff]
        %v1136 = vld [vmem:[#allocation8 + $0xd0] sm:$0xff]
        %v1137 = vld [vmem:[#allocation8 + $0xd8] sm:$0xff]
        %v1138 = vld [vmem:[#allocation8 + $0xe0] sm:$0xff]
        %v1139 = vld [vmem:[#allocation8 + $0xe8] sm:$0xff]
        %v1140 = vld [vmem:[#allocation8 + $0xf0] sm:$0xff]
        %v1141 = vld [vmem:[#allocation8 + $0xf8] sm:$0xff]
        %v1142 = vld [vmem:[%s6] sm:$0x3]
        %v1144 = vlaneseq
        %v1145 = vshrl.u32 %v1144, 7
        %v1146 = vsub.s32 0, %v1145
        %v1147 = vrot.slane %v1142, %v1146
        %v1148 = vlaneseq
        %v1149 = vshrl.u32 %v1148, 7
        %v1150 = vsub.s32 1, %v1149
        %v1151 = vrot.slane %v1142, %v1150
        %v1186 = vunpack.c.l.b16 %v1110
        %v1187 = vunpack.c.h.b16 %v1110
        %v1188 = vunpack.c.l.b16 %v1111
        %v1189 = vunpack.c.h.b16 %v1111
        %v1190 = vunpack.c.l.b16 %v1112
        %v1191 = vunpack.c.h.b16 %v1112
        %v1192 = vunpack.c.l.b16 %v1113
        %v1193 = vunpack.c.h.b16 %v1113
        %v1194 = vunpack.c.l.b16 %v1114
        %v1195 = vunpack.c.h.b16 %v1114
        %v1196 = vunpack.c.l.b16 %v1115
        %v1197 = vunpack.c.h.b16 %v1115
        %v1198 = vunpack.c.l.b16 %v1116
        %v1199 = vunpack.c.h.b16 %v1116
        %v1200 = vunpack.c.l.b16 %v1117
        %v1201 = vunpack.c.h.b16 %v1117
        %v1202 = vunpack.c.l.b16 %v1118
        %v1203 = vunpack.c.h.b16 %v1118
        %v1204 = vunpack.c.l.b16 %v1119
        %v1205 = vunpack.c.h.b16 %v1119
        %v1206 = vunpack.c.l.b16 %v1120
        %v1207 = vunpack.c.h.b16 %v1120
        %v1208 = vunpack.c.l.b16 %v1121
        %v1209 = vunpack.c.h.b16 %v1121
        %v1210 = vunpack.c.l.b16 %v1122
        %v1211 = vunpack.c.h.b16 %v1122
        %v1212 = vunpack.c.l.b16 %v1123
        %v1213 = vunpack.c.h.b16 %v1123
        %v1214 = vunpack.c.l.b16 %v1124
        %v1215 = vunpack.c.h.b16 %v1124
        %v1216 = vunpack.c.l.b16 %v1125
        %v1217 = vunpack.c.h.b16 %v1125
        %v1218 = vunpack.c.l.b16 %v1126
        %v1219 = vunpack.c.h.b16 %v1126
        %v1220 = vunpack.c.l.b16 %v1127
        %v1221 = vunpack.c.h.b16 %v1127
        %v1222 = vunpack.c.l.b16 %v1128
        %v1223 = vunpack.c.h.b16 %v1128
        %v1224 = vunpack.c.l.b16 %v1129
        %v1225 = vunpack.c.h.b16 %v1129
        %v1226 = vunpack.c.l.b16 %v1130
        %v1227 = vunpack.c.h.b16 %v1130
        %v1228 = vunpack.c.l.b16 %v1131
        %v1229 = vunpack.c.h.b16 %v1131
        %v1230 = vunpack.c.l.b16 %v1132
        %v1231 = vunpack.c.h.b16 %v1132
        %v1232 = vunpack.c.l.b16 %v1133
        %v1233 = vunpack.c.h.b16 %v1133
        %v1234 = vunpack.c.l.b16 %v1134
        %v1235 = vunpack.c.h.b16 %v1134
        %v1236 = vunpack.c.l.b16 %v1135
        %v1237 = vunpack.c.h.b16 %v1135
        %v1238 = vunpack.c.l.b16 %v1136
        %v1239 = vunpack.c.h.b16 %v1136
        %v1240 = vunpack.c.l.b16 %v1137
        %v1241 = vunpack.c.h.b16 %v1137
        %v1242 = vunpack.c.l.b16 %v1138
        %v1243 = vunpack.c.h.b16 %v1138
        %v1244 = vunpack.c.l.b16 %v1139
        %v1245 = vunpack.c.h.b16 %v1139
        %v1246 = vunpack.c.l.b16 %v1140
        %v1247 = vunpack.c.h.b16 %v1140
        %v1248 = vunpack.c.l.b16 %v1141
        %v1249 = vunpack.c.h.b16 %v1141
        %v1250 = vpack.c.b16 %v1188, %v1186
        %v1251 = vpack.c.b16 %v1189, %v1187
        %v1252 = vpack.c.b16 %v1192, %v1190
        %v1253 = vpack.c.b16 %v1193, %v1191
        %v1254 = vpack.c.b16 %v1196, %v1194
        %v1255 = vpack.c.b16 %v1197, %v1195
        %v1256 = vpack.c.b16 %v1200, %v1198
        %v1257 = vpack.c.b16 %v1201, %v1199
        %v1258 = vpack.c.b16 %v1204, %v1202
        %v1259 = vpack.c.b16 %v1205, %v1203
        %v1260 = vpack.c.b16 %v1208, %v1206
        %v1261 = vpack.c.b16 %v1209, %v1207
        %v1262 = vpack.c.b16 %v1212, %v1210
        %v1263 = vpack.c.b16 %v1213, %v1211
        %v1264 = vpack.c.b16 %v1216, %v1214
        %v1265 = vpack.c.b16 %v1217, %v1215
        %v1266 = vpack.c.b16 %v1220, %v1218
        %v1267 = vpack.c.b16 %v1221, %v1219
        %v1268 = vpack.c.b16 %v1224, %v1222
        %v1269 = vpack.c.b16 %v1225, %v1223
        %v1270 = vpack.c.b16 %v1228, %v1226
        %v1271 = vpack.c.b16 %v1229, %v1227
        %v1272 = vpack.c.b16 %v1232, %v1230
        %v1273 = vpack.c.b16 %v1233, %v1231
        %v1274 = vpack.c.b16 %v1236, %v1234
        %v1275 = vpack.c.b16 %v1237, %v1235
        %v1276 = vpack.c.b16 %v1240, %v1238
        %v1277 = vpack.c.b16 %v1241, %v1239
        %v1278 = vpack.c.b16 %v1244, %v1242
        %v1279 = vpack.c.b16 %v1245, %v1243
        %v1280 = vpack.c.b16 %v1248, %v1246
        %v1281 = vpack.c.b16 %v1249, %v1247
        %1314 = vmatprep.subr.bf16.mxu0 %v1265
        %1315 = vmatpush1.bf16.msra.mxu0 %v1264
        %1316 = vmatprep.subr.bf16.mxu0 %v1263
        %1317 = vmatpush1.bf16.msra.mxu0 %v1262
        %1318 = vmatprep.subr.bf16.mxu0 %v1261
        %1319 = vmatpush1.bf16.msra.mxu0 %v1260
        %1320 = vmatprep.subr.bf16.mxu0 %v1259
        %1321 = vmatpush1.bf16.msra.mxu0 %v1258
        %1322 = vmatprep.subr.bf16.mxu0 %v1257
        %1323 = vmatpush1.bf16.msra.mxu0 %v1256
        %1324 = vmatprep.subr.bf16.mxu0 %v1255
        %1325 = vmatpush1.bf16.msra.mxu0 %v1254
        %1326 = vmatprep.subr.bf16.mxu0 %v1253
        %1327 = vmatpush1.bf16.msra.mxu0 %v1252
        %1328 = vmatprep.subr.bf16.mxu0 %v1251
        %1329 = vmatpush1.bf16.msra.mxu0 %v1250
        %1330 = vmatprep.subr.bf16.mxu0 %v1281
        %1331 = vmatpush2.bf16.msra.mxu0 %v1280
        %1332 = vmatprep.subr.bf16.mxu0 %v1279
        %1333 = vmatpush2.bf16.msra.mxu0 %v1278
        %1334 = vmatprep.subr.bf16.mxu0 %v1277
        %1335 = vmatpush2.bf16.msra.mxu0 %v1276
        %1336 = vmatprep.subr.bf16.mxu0 %v1275
        %1337 = vmatpush2.bf16.msra.mxu0 %v1274
        %1338 = vmatprep.subr.bf16.mxu0 %v1273
        %1339 = vmatpush2.bf16.msra.mxu0 %v1272
        %1340 = vmatprep.subr.bf16.mxu0 %v1271
        %1341 = vmatpush2.bf16.msra.mxu0 %v1270
        %1342 = vmatprep.subr.bf16.mxu0 %v1269
        %1343 = vmatpush2.bf16.msra.mxu0 %v1268
        %1344 = vmatprep.subr.bf16.mxu0 %v1267
        %1345 = vmatpush2.bf16.msra.mxu0 %v1266
        %1346 = vmatprep.mubr.bf16.mxu0 %v1095
        %1347 = vmatmul.mubr.bf16.gmra.mxu0 %v1094
        %v1348 = vpop.f32.mrf.mxu0
        %v1349 = vadd.f32 %v1147, %v1348
        %v1350 = vpop.f32.mrf.mxu0
        %v1351 = vadd.f32 %v1151, %v1350
        %v1352 = vpop.f32.mrf.mxu0
        %v1353 = vadd.f32 %v1147, %v1352
        %v1354 = vpop.f32.mrf.mxu0
        %v1355 = vadd.f32 %v1151, %v1354
        %1356 = vmatprep.mubr.bf16.mxu0 %v1097
        %1357 = vmatmul.mubr.bf16.gmra.mxu0 %v1096
        %v1358 = vpop.f32.mrf.mxu0
        %v1359 = vadd.f32 %v1147, %v1358
        %v1360 = vpop.f32.mrf.mxu0
        %v1361 = vadd.f32 %v1151, %v1360
        %v1362 = vpop.f32.mrf.mxu0
        %v1363 = vadd.f32 %v1147, %v1362
        %v1364 = vpop.f32.mrf.mxu0
        %v1365 = vadd.f32 %v1151, %v1364
        %1366 = vmatprep.mubr.bf16.mxu0 %v1099
        %1367 = vmatmul.mubr.bf16.gmra.mxu0 %v1098
        %v1368 = vpop.f32.mrf.mxu0
        %v1369 = vadd.f32 %v1147, %v1368
        %v1370 = vpop.f32.mrf.mxu0
        %v1371 = vadd.f32 %v1151, %v1370
        %v1372 = vpop.f32.mrf.mxu0
        %v1373 = vadd.f32 %v1147, %v1372
        %v1374 = vpop.f32.mrf.mxu0
        %v1375 = vadd.f32 %v1151, %v1374
        %1376 = vmatprep.mubr.bf16.mxu0 %v1101
        %1377 = vmatmul.mubr.bf16.gmra.mxu0 %v1100
        %v1378 = vpop.f32.mrf.mxu0
        %v1379 = vadd.f32 %v1147, %v1378
        %v1380 = vpop.f32.mrf.mxu0
        %v1381 = vadd.f32 %v1151, %v1380
        %v1382 = vpop.f32.mrf.mxu0
        %v1383 = vadd.f32 %v1147, %v1382
        %v1384 = vpop.f32.mrf.mxu0
        %v1385 = vadd.f32 %v1151, %v1384
        %1386 = vmatprep.mubr.bf16.mxu0 %v1103
        %1387 = vmatmul.mubr.bf16.gmra.mxu0 %v1102
        %v1388 = vpop.f32.mrf.mxu0
        %v1389 = vadd.f32 %v1147, %v1388
        %v1390 = vpop.f32.mrf.mxu0
        %v1391 = vadd.f32 %v1151, %v1390
        %v1392 = vpop.f32.mrf.mxu0
        %v1393 = vadd.f32 %v1147, %v1392
        %v1394 = vpop.f32.mrf.mxu0
        %v1395 = vadd.f32 %v1151, %v1394
        %1396 = vmatprep.mubr.bf16.mxu0 %v1105
        %1397 = vmatmul.mubr.bf16.gmra.mxu0 %v1104
        %v1398 = vpop.f32.mrf.mxu0
        %v1399 = vadd.f32 %v1147, %v1398
        %v1400 = vpop.f32.mrf.mxu0
        %v1401 = vadd.f32 %v1151, %v1400
        %v1402 = vpop.f32.mrf.mxu0
        %v1403 = vadd.f32 %v1147, %v1402
        %v1404 = vpop.f32.mrf.mxu0
        %v1405 = vadd.f32 %v1151, %v1404
        %1406 = vmatprep.mubr.bf16.mxu0 %v1107
        %1407 = vmatmul.mubr.bf16.gmra.mxu0 %v1106
        %v1408 = vpop.f32.mrf.mxu0
        %v1409 = vadd.f32 %v1147, %v1408
        %v1410 = vpop.f32.mrf.mxu0
        %v1411 = vadd.f32 %v1151, %v1410
        %v1412 = vpop.f32.mrf.mxu0
        %v1413 = vadd.f32 %v1147, %v1412
        %v1414 = vpop.f32.mrf.mxu0
        %v1415 = vadd.f32 %v1151, %v1414
        %1416 = vmatprep.mubr.bf16.mxu0 %v1109
        %1417 = vmatmul.mubr.bf16.gmra.mxu0 %v1108
        %v1418 = vpop.f32.mrf.mxu0
        %v1419 = vadd.f32 %v1147, %v1418
        %v1420 = vpop.f32.mrf.mxu0
        %v1421 = vadd.f32 %v1151, %v1420
        %v1422 = vpop.f32.mrf.mxu0
        %v1423 = vadd.f32 %v1147, %v1422
        %v1424 = vpop.f32.mrf.mxu0
        %v1425 = vadd.f32 %v1151, %v1424
        %1426 = vdwg.mxu0
        %v1427 = vmax.f32 %v1349, 0.0
        %v1428 = vmax.f32 %v1351, 0.0
        %v1429 = vmax.f32 %v1353, 0.0
        %v1430 = vmax.f32 %v1355, 0.0
        %v1431 = vmax.f32 %v1359, 0.0
        %v1432 = vmax.f32 %v1361, 0.0
        %v1433 = vmax.f32 %v1363, 0.0
        %v1434 = vmax.f32 %v1365, 0.0
        %v1435 = vmax.f32 %v1369, 0.0
        %v1436 = vmax.f32 %v1371, 0.0
        %v1437 = vmax.f32 %v1373, 0.0
        %v1438 = vmax.f32 %v1375, 0.0
        %v1439 = vmax.f32 %v1379, 0.0
        %v1440 = vmax.f32 %v1381, 0.0
        %v1441 = vmax.f32 %v1383, 0.0
        %v1442 = vmax.f32 %v1385, 0.0
        %v1443 = vmax.f32 %v1389, 0.0
        %v1444 = vmax.f32 %v1391, 0.0
        %v1445 = vmax.f32 %v1393, 0.0
        %v1446 = vmax.f32 %v1395, 0.0
        %v1447 = vmax.f32 %v1399, 0.0
        %v1448 = vmax.f32 %v1401, 0.0
        %v1449 = vmax.f32 %v1403, 0.0
        %v1450 = vmax.f32 %v1405, 0.0
        %v1451 = vmax.f32 %v1409, 0.0
        %v1452 = vmax.f32 %v1411, 0.0
        %v1453 = vmax.f32 %v1413, 0.0
        %v1454 = vmax.f32 %v1415, 0.0
        %v1455 = vmax.f32 %v1419, 0.0
        %v1456 = vmax.f32 %v1421, 0.0
        %v1457 = vmax.f32 %v1423, 0.0
        %v1458 = vmax.f32 %v1425, 0.0
        %v1459 = vpack.c.bf16 %v1429, %v1427
        %v1460 = vpack.c.bf16 %v1430, %v1428
        %v1461 = vpack.c.bf16 %v1433, %v1431
        %v1462 = vpack.c.bf16 %v1434, %v1432
        %v1463 = vpack.c.bf16 %v1437, %v1435
        %v1464 = vpack.c.bf16 %v1438, %v1436
        %v1465 = vpack.c.bf16 %v1441, %v1439
        %v1466 = vpack.c.bf16 %v1442, %v1440
        %v1467 = vpack.c.bf16 %v1445, %v1443
        %v1468 = vpack.c.bf16 %v1446, %v1444
        %v1469 = vpack.c.bf16 %v1449, %v1447
        %v1470 = vpack.c.bf16 %v1450, %v1448
        %v1471 = vpack.c.bf16 %v1453, %v1451
        %v1472 = vpack.c.bf16 %v1454, %v1452
        %v1473 = vpack.c.bf16 %v1457, %v1455
        %v1474 = vpack.c.bf16 %v1458, %v1456
        %v1475 = vld [vmem:[#allocation10] sm:$0xf]
        %v1476 = vld [vmem:[#allocation10 + $0x4] sm:$0xf]
        %v1477 = vld [vmem:[#allocation10 + $0x8] sm:$0xf]
        %v1478 = vld [vmem:[#allocation10 + $0xc] sm:$0xf]
        %v1479 = vld [vmem:[#allocation10 + $0x10] sm:$0xf]
        %v1480 = vld [vmem:[#allocation10 + $0x14] sm:$0xf]
        %v1481 = vld [vmem:[#allocation10 + $0x18] sm:$0xf]
        %v1482 = vld [vmem:[#allocation10 + $0x1c] sm:$0xf]
        %v1483 = vld [vmem:[#allocation10 + $0x20] sm:$0xf]
        %v1484 = vld [vmem:[#allocation10 + $0x24] sm:$0xf]
        %v1485 = vld [vmem:[#allocation10 + $0x28] sm:$0xf]
        %v1486 = vld [vmem:[#allocation10 + $0x2c] sm:$0xf]
        %v1487 = vld [vmem:[#allocation10 + $0x30] sm:$0xf]
        %v1488 = vld [vmem:[#allocation10 + $0x34] sm:$0xf]
        %v1489 = vld [vmem:[#allocation10 + $0x38] sm:$0xf]
        %v1490 = vld [vmem:[#allocation10 + $0x3c] sm:$0xf]
        %v1491 = vld [vmem:[#allocation10 + $0x40] sm:$0xf]
        %v1492 = vld [vmem:[#allocation10 + $0x44] sm:$0xf]
        %v1493 = vld [vmem:[#allocation10 + $0x48] sm:$0xf]
        %v1494 = vld [vmem:[#allocation10 + $0x4c] sm:$0xf]
        %v1495 = vld [vmem:[#allocation10 + $0x50] sm:$0xf]
        %v1496 = vld [vmem:[#allocation10 + $0x54] sm:$0xf]
        %v1497 = vld [vmem:[#allocation10 + $0x58] sm:$0xf]
        %v1498 = vld [vmem:[#allocation10 + $0x5c] sm:$0xf]
        %v1499 = vld [vmem:[#allocation10 + $0x60] sm:$0xf]
        %v1500 = vld [vmem:[#allocation10 + $0x64] sm:$0xf]
        %v1501 = vld [vmem:[#allocation10 + $0x68] sm:$0xf]
        %v1502 = vld [vmem:[#allocation10 + $0x6c] sm:$0xf]
        %v1503 = vld [vmem:[#allocation10 + $0x70] sm:$0xf]
        %v1504 = vld [vmem:[#allocation10 + $0x74] sm:$0xf]
        %v1505 = vld [vmem:[#allocation10 + $0x78] sm:$0xf]
        %v1506 = vld [vmem:[#allocation10 + $0x7c] sm:$0xf]
        %v1507 = vld [vmem:[%s8] sm:$0x1]
        %v1509 = vlaneseq
        %v1510 = vshrl.u32 %v1509, 7
        %v1511 = vsub.s32 0, %v1510
        %v1512 = vrot.slane %v1507, %v1511
        %v1546 = vunpack.c.l.b16 %v1475
        %v1547 = vunpack.c.l.b16 %v1476
        %v1548 = vunpack.c.l.b16 %v1477
        %v1549 = vunpack.c.l.b16 %v1478
        %v1550 = vunpack.c.l.b16 %v1479
        %v1551 = vunpack.c.l.b16 %v1480
        %v1552 = vunpack.c.l.b16 %v1481
        %v1553 = vunpack.c.l.b16 %v1482
        %v1554 = vunpack.c.l.b16 %v1483
        %v1555 = vunpack.c.l.b16 %v1484
        %v1556 = vunpack.c.l.b16 %v1485
        %v1557 = vunpack.c.l.b16 %v1486
        %v1558 = vunpack.c.l.b16 %v1487
        %v1559 = vunpack.c.l.b16 %v1488
        %v1560 = vunpack.c.l.b16 %v1489
        %v1561 = vunpack.c.l.b16 %v1490
        %v1562 = vunpack.c.l.b16 %v1491
        %v1563 = vunpack.c.l.b16 %v1492
        %v1564 = vunpack.c.l.b16 %v1493
        %v1565 = vunpack.c.l.b16 %v1494
        %v1566 = vunpack.c.l.b16 %v1495
        %v1567 = vunpack.c.l.b16 %v1496
        %v1568 = vunpack.c.l.b16 %v1497
        %v1569 = vunpack.c.l.b16 %v1498
        %v1570 = vunpack.c.l.b16 %v1499
        %v1571 = vunpack.c.l.b16 %v1500
        %v1572 = vunpack.c.l.b16 %v1501
        %v1573 = vunpack.c.l.b16 %v1502
        %v1574 = vunpack.c.l.b16 %v1503
        %v1575 = vunpack.c.l.b16 %v1504
        %v1576 = vunpack.c.l.b16 %v1505
        %v1577 = vunpack.c.l.b16 %v1506
        %v1578 = vpack.c.b16 %v1547, %v1546
        %v1579 = vpack.c.b16 %v1549, %v1548
        %v1580 = vpack.c.b16 %v1551, %v1550
        %v1581 = vpack.c.b16 %v1553, %v1552
        %v1582 = vpack.c.b16 %v1555, %v1554
        %v1583 = vpack.c.b16 %v1557, %v1556
        %v1584 = vpack.c.b16 %v1559, %v1558
        %v1585 = vpack.c.b16 %v1561, %v1560
        %v1586 = vpack.c.b16 %v1563, %v1562
        %v1587 = vpack.c.b16 %v1565, %v1564
        %v1588 = vpack.c.b16 %v1567, %v1566
        %v1589 = vpack.c.b16 %v1569, %v1568
        %v1590 = vpack.c.b16 %v1571, %v1570
        %v1591 = vpack.c.b16 %v1573, %v1572
        %v1592 = vpack.c.b16 %v1575, %v1574
        %v1593 = vpack.c.b16 %v1577, %v1576
        %1610 = vmatprep.subr.bf16.mxu0 0
        %1611 = vmatpush1.bf16.msra.mxu0 %v1585
        %1612 = vmatprep.subr.bf16.mxu0 0
        %1613 = vmatpush1.bf16.msra.mxu0 %v1584
        %1614 = vmatprep.subr.bf16.mxu0 0
        %1615 = vmatpush1.bf16.msra.mxu0 %v1583
        %1616 = vmatprep.subr.bf16.mxu0 0
        %1617 = vmatpush1.bf16.msra.mxu0 %v1582
        %1618 = vmatprep.subr.bf16.mxu0 0
        %1619 = vmatpush1.bf16.msra.mxu0 %v1581
        %1620 = vmatprep.subr.bf16.mxu0 0
        %1621 = vmatpush1.bf16.msra.mxu0 %v1580
        %1622 = vmatprep.subr.bf16.mxu0 0
        %1623 = vmatpush1.bf16.msra.mxu0 %v1579
        %1624 = vmatprep.subr.bf16.mxu0 0
        %1625 = vmatpush1.bf16.msra.mxu0 %v1578
        %1626 = vmatprep.subr.bf16.mxu0 0
        %1627 = vmatpush2.bf16.msra.mxu0 %v1593
        %1628 = vmatprep.subr.bf16.mxu0 0
        %1629 = vmatpush2.bf16.msra.mxu0 %v1592
        %1630 = vmatprep.subr.bf16.mxu0 0
        %1631 = vmatpush2.bf16.msra.mxu0 %v1591
        %1632 = vmatprep.subr.bf16.mxu0 0
        %1633 = vmatpush2.bf16.msra.mxu0 %v1590
        %1634 = vmatprep.subr.bf16.mxu0 0
        %1635 = vmatpush2.bf16.msra.mxu0 %v1589
        %1636 = vmatprep.subr.bf16.mxu0 0
        %1637 = vmatpush2.bf16.msra.mxu0 %v1588
        %1638 = vmatprep.subr.bf16.mxu0 0
        %1639 = vmatpush2.bf16.msra.mxu0 %v1587
        %1640 = vmatprep.subr.bf16.mxu0 0
        %1641 = vmatpush2.bf16.msra.mxu0 %v1586
        %1642 = vmatprep.mubr.bf16.mxu0 %v1460
        %1643 = vmatmul.mubr.bf16.gmra.mxu0 %v1459
        %v1644 = vpop.f32.mrf.mxu0
        %v1645 = vadd.f32 %v1512, %v1644
        %v1646 = vpop.f32.mrf.mxu0
        %v1647 = vpop.f32.mrf.mxu0
        %v1648 = vadd.f32 %v1512, %v1647
        %v1649 = vpop.f32.mrf.mxu0
        %1650 = vmatprep.mubr.bf16.mxu0 %v1462
        %1651 = vmatmul.mubr.bf16.gmra.mxu0 %v1461
        %v1652 = vpop.f32.mrf.mxu0
        %v1653 = vadd.f32 %v1512, %v1652
        %v1654 = vpop.f32.mrf.mxu0
        %v1655 = vpop.f32.mrf.mxu0
        %v1656 = vadd.f32 %v1512, %v1655
        %v1657 = vpop.f32.mrf.mxu0
        %1658 = vmatprep.mubr.bf16.mxu0 %v1464
        %1659 = vmatmul.mubr.bf16.gmra.mxu0 %v1463
        %v1660 = vpop.f32.mrf.mxu0
        %v1661 = vadd.f32 %v1512, %v1660
        %v1662 = vpop.f32.mrf.mxu0
        %v1663 = vpop.f32.mrf.mxu0
        %v1664 = vadd.f32 %v1512, %v1663
        %v1665 = vpop.f32.mrf.mxu0
        %1666 = vmatprep.mubr.bf16.mxu0 %v1466
        %1667 = vmatmul.mubr.bf16.gmra.mxu0 %v1465
        %v1668 = vpop.f32.mrf.mxu0
        %v1669 = vadd.f32 %v1512, %v1668
        %v1670 = vpop.f32.mrf.mxu0
        %v1671 = vpop.f32.mrf.mxu0
        %v1672 = vadd.f32 %v1512, %v1671
        %v1673 = vpop.f32.mrf.mxu0
        %1674 = vmatprep.mubr.bf16.mxu0 %v1468
        %1675 = vmatmul.mubr.bf16.gmra.mxu0 %v1467
        %v1676 = vpop.f32.mrf.mxu0
        %v1677 = vadd.f32 %v1512, %v1676
        %v1678 = vpop.f32.mrf.mxu0
        %v1679 = vpop.f32.mrf.mxu0
        %v1680 = vadd.f32 %v1512, %v1679
        %v1681 = vpop.f32.mrf.mxu0
        %1682 = vmatprep.mubr.bf16.mxu0 %v1470
        %1683 = vmatmul.mubr.bf16.gmra.mxu0 %v1469
        %v1684 = vpop.f32.mrf.mxu0
        %v1685 = vadd.f32 %v1512, %v1684
        %v1686 = vpop.f32.mrf.mxu0
        %v1687 = vpop.f32.mrf.mxu0
        %v1688 = vadd.f32 %v1512, %v1687
        %v1689 = vpop.f32.mrf.mxu0
        %1690 = vmatprep.mubr.bf16.mxu0 %v1472
        %1691 = vmatmul.mubr.bf16.gmra.mxu0 %v1471
        %v1692 = vpop.f32.mrf.mxu0
        %v1693 = vadd.f32 %v1512, %v1692
        %v1694 = vpop.f32.mrf.mxu0
        %v1695 = vpop.f32.mrf.mxu0
        %v1696 = vadd.f32 %v1512, %v1695
        %v1697 = vpop.f32.mrf.mxu0
        %1698 = vmatprep.mubr.bf16.mxu0 %v1474
        %1699 = vmatmul.mubr.bf16.gmra.mxu0 %v1473
        %v1700 = vpop.f32.mrf.mxu0
        %v1701 = vadd.f32 %v1512, %v1700
        %v1702 = vpop.f32.mrf.mxu0
        %v1703 = vpop.f32.mrf.mxu0
        %v1704 = vadd.f32 %v1512, %v1703
        %v1705 = vpop.f32.mrf.mxu0
        %1706 = vdwg.mxu0
        %v1707 = vxor.u32 %v1645, 2147483648
        %v1708 = vxor.u32 %v1648, 2147483648
        %v1709 = vxor.u32 %v1653, 2147483648
        %v1710 = vxor.u32 %v1656, 2147483648
        %v1711 = vxor.u32 %v1661, 2147483648
        %v1712 = vxor.u32 %v1664, 2147483648
        %v1713 = vxor.u32 %v1669, 2147483648
        %v1714 = vxor.u32 %v1672, 2147483648
        %v1715 = vxor.u32 %v1677, 2147483648
        %v1716 = vxor.u32 %v1680, 2147483648
        %v1717 = vxor.u32 %v1685, 2147483648
        %v1718 = vxor.u32 %v1688, 2147483648
        %v1719 = vxor.u32 %v1693, 2147483648
        %v1720 = vxor.u32 %v1696, 2147483648
        %v1721 = vxor.u32 %v1701, 2147483648
        %v1722 = vxor.u32 %v1704, 2147483648
        %v1723 = vmul.f32 %v1707, 1.442695
        %v1724 = vpow.pop %v1723
        %v1725 = vmul.f32 %v1708, 1.442695
        %v1726 = vpow.pop %v1725
        %v1727 = vmul.f32 %v1709, 1.442695
        %v1728 = vpow.pop %v1727
        %v1729 = vmul.f32 %v1710, 1.442695
        %v1730 = vpow.pop %v1729
        %v1731 = vmul.f32 %v1711, 1.442695
        %v1732 = vpow.pop %v1731
        %v1733 = vmul.f32 %v1712, 1.442695
        %v1734 = vpow.pop %v1733
        %v1735 = vmul.f32 %v1713, 1.442695
        %v1736 = vpow.pop %v1735
        %v1737 = vmul.f32 %v1714, 1.442695
        %v1738 = vpow.pop %v1737
        %v1739 = vmul.f32 %v1715, 1.442695
        %v1740 = vpow.pop %v1739
        %v1741 = vmul.f32 %v1716, 1.442695
        %v1742 = vpow.pop %v1741
        %v1743 = vmul.f32 %v1717, 1.442695
        %v1744 = vpow.pop %v1743
        %v1745 = vmul.f32 %v1718, 1.442695
        %v1746 = vpow.pop %v1745
        %v1747 = vmul.f32 %v1719, 1.442695
        %v1748 = vpow.pop %v1747
        %v1749 = vmul.f32 %v1720, 1.442695
        %v1750 = vpow.pop %v1749
        %v1751 = vmul.f32 %v1721, 1.442695
        %v1752 = vpow.pop %v1751
        %v1753 = vmul.f32 %v1722, 1.442695
        %v1754 = vpow.pop %v1753
        %v1755 = vadd.f32 %v1724, 1.0
        %v1756 = vadd.f32 %v1726, 1.0
        %v1757 = vadd.f32 %v1728, 1.0
        %v1758 = vadd.f32 %v1730, 1.0
        %v1759 = vadd.f32 %v1732, 1.0
        %v1760 = vadd.f32 %v1734, 1.0
        %v1761 = vadd.f32 %v1736, 1.0
        %v1762 = vadd.f32 %v1738, 1.0
        %v1763 = vadd.f32 %v1740, 1.0
        %v1764 = vadd.f32 %v1742, 1.0
        %v1765 = vadd.f32 %v1744, 1.0
        %v1766 = vadd.f32 %v1746, 1.0
        %v1767 = vadd.f32 %v1748, 1.0
        %v1768 = vadd.f32 %v1750, 1.0
        %v1769 = vadd.f32 %v1752, 1.0
        %v1770 = vadd.f32 %v1754, 1.0
        %v1771 = vrcp.pop %v1755
        %v1772 = vmul.f32 1.0, %v1771
        %v1773 = vrcp.pop %v1756
        %v1774 = vmul.f32 1.0, %v1773
        %v1775 = vrcp.pop %v1757
        %v1776 = vmul.f32 1.0, %v1775
        %v1777 = vrcp.pop %v1758
        %v1778 = vmul.f32 1.0, %v1777
        %v1779 = vrcp.pop %v1759
        %v1780 = vmul.f32 1.0, %v1779
        %v1781 = vrcp.pop %v1760
        %v1782 = vmul.f32 1.0, %v1781
        %v1783 = vrcp.pop %v1761
        %v1784 = vmul.f32 1.0, %v1783
        %v1785 = vrcp.pop %v1762
        %v1786 = vmul.f32 1.0, %v1785
        %v1787 = vrcp.pop %v1763
        %v1788 = vmul.f32 1.0, %v1787
        %v1789 = vrcp.pop %v1764
        %v1790 = vmul.f32 1.0, %v1789
        %v1791 = vrcp.pop %v1765
        %v1792 = vmul.f32 1.0, %v1791
        %v1793 = vrcp.pop %v1766
        %v1794 = vmul.f32 1.0, %v1793
        %v1795 = vrcp.pop %v1767
        %v1796 = vmul.f32 1.0, %v1795
        %v1797 = vrcp.pop %v1768
        %v1798 = vmul.f32 1.0, %v1797
        %v1799 = vrcp.pop %v1769
        %v1800 = vmul.f32 1.0, %v1799
        %v1801 = vrcp.pop %v1770
        %v1802 = vmul.f32 1.0, %v1801
        %1803 = vst [vmem:[%s408] sm:$0xff] %v1772
        %1804 = vst [vmem:[%s408 + $0x8] sm:$0xff] %v1774
        %1805 = vst [vmem:[%s408 + $0x10] sm:$0xff] %v1776
        %1806 = vst [vmem:[%s408 + $0x18] sm:$0xff] %v1778
        %1807 = vst [vmem:[%s408 + $0x20] sm:$0xff] %v1780
        %1808 = vst [vmem:[%s408 + $0x28] sm:$0xff] %v1782
        %1809 = vst [vmem:[%s408 + $0x30] sm:$0xff] %v1784
        %1810 = vst [vmem:[%s408 + $0x38] sm:$0xff] %v1786
        %1811 = vst [vmem:[%s408 + $0x40] sm:$0xff] %v1788
        %1812 = vst [vmem:[%s408 + $0x48] sm:$0xff] %v1790
        %1813 = vst [vmem:[%s408 + $0x50] sm:$0xff] %v1792
        %1814 = vst [vmem:[%s408 + $0x58] sm:$0xff] %v1794
        %1815 = vst [vmem:[%s408 + $0x60] sm:$0xff] %v1796
        %1816 = vst [vmem:[%s408 + $0x68] sm:$0xff] %v1798
        %1817 = vst [vmem:[%s408 + $0x70] sm:$0xff] %v1800
        %1818 = vst [vmem:[%s408 + $0x78] sm:$0xff] %v1802
        %s1819 = sand.u32 %s230, 1
        %s1820 = scalar_lea.sflag [#allocation4], %s1819
        %s1821 = sand.u32 %s230, 1
        %s1822 = smul.addr %s1821, 128
        %s1823 = scalar_lea.vmem [#allocation11], %s1822
        // Predicated region
        $region77: #{tpu_custom_call.1} parent=55 // pred_check
          %p1824 = pneg %p240
        $region78: #{tpu_custom_call.1} parent=55 // pred_check_branch
          %1826 = sbr.rel (%p1824) target = $region80
        $region79: #{tpu_custom_call.1} parent=55 // pred_region
          %s1827 = smul.u32 16, %s28
          %s1829 = ssub.s32 2048, 2048
          %1830 = vsyncadd %s1820, %s1829
          %s1831 = smul.addr %s1827, 128
          %s1832 = scalar_lea.hbm %s9, %s1831
          %s1833 = sshll.u32 %s1823, 4
          %s1834 = int_to_ptr.vmem [resolvable:$true] %s1833
          %1839 = dma.vmem_to_hbm [thread:$0]  %s1834, 2048, %s1832, %s1820, 128, 128, 8
        $region80: #{tpu_custom_call.1} parent=55 // pred_fallthru
          _
      $region56: #{tpu_custom_call.1} parent=5 // pred_fallthru
        _
      %p1840 = scmp.le.s32.totalorder 2, %s23
      // Predicated region
      $region81: #{tpu_custom_call.1} parent=5 // pred_check
        %p1841 = pneg %p1840
      $region82: #{tpu_custom_call.1} parent=5 // pred_check_branch
        %1843 = sbr.rel (%p1841) target = $region84
      $region83: #{tpu_custom_call.1} parent=5 // pred_region
        %s1844 = ssub.s32 %s23, 2
        // Predicated region
        $region85: #{tpu_custom_call.1} parent=83 // pred_check
          %p1845 = pneg %p246
        $region86: #{tpu_custom_call.1} parent=83 // pred_check_branch
          %1847 = sbr.rel (%p1845) target = $region88
        $region87: #{tpu_custom_call.1} parent=83 // pred_region
          %s1848 = sand.u32 %s231, 1
          %s1849 = scalar_lea.sflag [#allocation4], %s1848
          %s1850 = sand.u32 %s231, 1
          %s1851 = smul.addr %s1850, 128
          %s1852 = scalar_lea.vmem [#allocation11], %s1851
          %1853 = dma.done %s1849, 2048
        $region88: #{tpu_custom_call.1} parent=83 // pred_fallthru
          _
      $region84: #{tpu_custom_call.1} parent=5 // pred_fallthru
        _
    $region6: #{tpu_custom_call.1} parent=1 // loop_footer
      %s27 = sadd.s32 1, %s23
    $region7: #{tpu_custom_call.1} parent=1 // loop_footer_branch
      %22 = sbr.rel target = $region3
    $region8: #{tpu_custom_call.1} parent=1 // loop_exit
      _
    %1854 = vsyncpa [#allocation3], 1
    %s1855 = scalar_lea.sflag [#allocation3], 1
    %1856 = vsyncpa %s1855, 1
    %1857 = vsyncpa [#allocation6], 1
    %1858 = vsyncpa [#allocation9], 1
    %1859 = vsyncpa [#allocation4], 1
    %s1860 = scalar_lea.sflag [#allocation4], 1
    %1861 = vsyncpa %s1860, 1

</llo_original>
